<compile_context>
chip_gen: v5e
topology: v5e:2x2
jax: 0.10.0
libtpu: 0.0.40
codegen_flags: <defaults>
</compile_context>

<pallas_src>
import functools
import math

import jax
import jax.numpy as jnp
from jax.experimental import pallas as pl
from jax.experimental.pallas import tpu as pltpu


def _mhcsa_kernel(x_ref, y_ref, wq_ref, wk_ref, wv_ref, att_ref, dist_ref, *,
                  bb, nh, nx, ny, dk, dv):
    """One grid step processes `bb` batch elements.

    x_ref : (bb*nx, Dx)        y_ref : (bb*ny, Dy)
    wq_ref: (Dx, dim_k)  (1/sqrt(dk) folded in)
    wk_ref: (Dy, dim_k)        wv_ref: (Dy, dim_v)
    att_ref : (bb, nx, dim_v)  dist_ref: (bb, nh, nx, ny)
    """
    # Flat lane-dense projections: single 2-D matmuls, f32 accumulation.
    q = jnp.dot(x_ref[...], wq_ref[...], preferred_element_type=jnp.float32)
    k = jnp.dot(y_ref[...], wk_ref[...], preferred_element_type=jnp.float32)
    v = jnp.dot(y_ref[...], wv_ref[...], preferred_element_type=jnp.float32)

    # Head axis introduced only now; (batch*heads) fused into one leading batch
    # axis so both attention einsums are the known-good 3-D batched form.
    qh = q.reshape(bb, nx, nh, dk).transpose(0, 2, 1, 3).reshape(bb * nh, nx, dk)
    kh = k.reshape(bb, ny, nh, dk).transpose(0, 2, 1, 3).reshape(bb * nh, ny, dk)
    vh = v.reshape(bb, ny, nh, dv).transpose(0, 2, 1, 3).reshape(bb * nh, ny, dv)

    # attn_mask is never applied in the reference forward -> not used here.
    s = jnp.einsum("bqc,bkc->bqk", qh, kh,
                   preferred_element_type=jnp.float32)          # (bb*nh, nx, ny)
    s = s - jnp.max(s, axis=-1, keepdims=True)                  # stabilized
    p = jnp.exp(s)
    p = p / jnp.sum(p, axis=-1, keepdims=True)                  # exact: dist is user-visible

    dist_ref[...] = p.reshape(bb, nh, nx, ny).astype(dist_ref.dtype)

    att = jnp.einsum("bqk,bkd->bqd", p, vh,
                     preferred_element_type=jnp.float32)        # (bb*nh, nx, dv)
    # Lane-dense store: heads concatenated along the last dim inside the kernel.
    att = (att.reshape(bb, nh, nx, dv)
              .transpose(0, 2, 1, 3)
              .reshape(bb, nx, nh * dv))
    att_ref[...] = att.astype(att_ref.dtype)


def multi_head_cross_self_attention(x, y, attn_mask, params, *, num_heads=6,
                                    mxu_dtype=None, dist_dtype=None,
                                    split_batch_across_cores=False):
    """Forward of MultiHeadCrossSelfAttention (eval mode).

    `params` use the PyTorch nn.Linear layout (out_features, in_features):
      wq: (dim_k, dim_in_x), wk: (dim_k, dim_in_y), wv: (dim_v, dim_in_y)
    Returns (result, dist_out) exactly like the reference module.
    """
    del attn_mask  # repeated but never applied in the PyTorch forward
    B, Nx, Dx = x.shape
    By, Ny, Dy = y.shape
    assert By == B
    wq, wk, wv = params["wq"], params["wk"], params["wv"]
    dim_k, dim_v = wq.shape[0], wv.shape[0]
    assert wq.shape == (dim_k, Dx) and wk.shape == (dim_k, Dy)
    assert wv.shape == (dim_v, Dy)
    assert dim_k % num_heads == 0 and dim_v % num_heads == 0
    dk, dv = dim_k // num_heads, dim_v // num_heads

    # Trace-time prep (plain JAX, fused by XLA):
    #   PyTorch (out,in) -> (in,out); fold 1/sqrt(dk) into Wq.
    #   No head split of the weights and no K|V lane fusion.
    scale = 1.0 / math.sqrt(dk)
    wq_t = wq.T * scale            # (Dx, dim_k)
    wk_t = wk.T                    # (Dy, dim_k)
    wv_t = wv.T                    # (Dy, dim_v)

    # Fold batch into the row dim: projections see B*N MXU rows and (by
    # default) the whole forward is a single grid step.
    x2 = x.reshape(B * Nx, Dx)
    y2 = y.reshape(B * Ny, Dy)

    if mxu_dtype is not None:      # bf16 MXU operands for scaled-up shapes
        x2, y2 = x2.astype(mxu_dtype), y2.astype(mxu_dtype)
        wq_t, wk_t, wv_t = (w.astype(mxu_dtype) for w in (wq_t, wk_t, wv_t))

    out_dtype = x.dtype
    dist_dtype = out_dtype if dist_dtype is None else dist_dtype

    if split_batch_across_cores:
        # v7x: one batch element per TensorCore (2 TCs/chip).
        bb, grid, sem = 1, (B,), (pltpu.CORE_PARALLEL,)
    else:
        # v5e / v6e (1 TC): single grid step, no per-step pipeline overhead.
        bb, grid, sem = B, (1,), ("arbitrary",)

    kernel = functools.partial(_mhcsa_kernel, bb=bb, nh=num_heads,
                               nx=Nx, ny=Ny, dk=dk, dv=dv)

    result, dist = pl.pallas_call(
        kernel,
        out_shape=(
            jax.ShapeDtypeStruct((B, Nx, dim_v), out_dtype),            # result
            jax.ShapeDtypeStruct((B, num_heads, Nx, Ny), dist_dtype),   # softmax weights
        ),
        grid_spec=pltpu.PrefetchScalarGridSpec(
            num_scalar_prefetch=0,
            grid=grid,
            in_specs=[
                pl.BlockSpec((bb * Nx, Dx), lambda i: (i, 0)),          # x rows
                pl.BlockSpec((bb * Ny, Dy), lambda i: (i, 0)),          # y rows
                pl.BlockSpec((Dx, dim_k), lambda i: (0, 0)),            # Wq (scaled)
                pl.BlockSpec((Dy, dim_k), lambda i: (0, 0)),            # Wk
                pl.BlockSpec((Dy, dim_v), lambda i: (0, 0)),            # Wv
            ],
            out_specs=[
                pl.BlockSpec((bb, Nx, dim_v), lambda i: (i, 0, 0)),
                pl.BlockSpec((bb, num_heads, Nx, Ny), lambda i: (i, 0, 0, 0)),
            ],
        ),
        compiler_params=pltpu.CompilerParams(dimension_semantics=sem),
    )(x2, y2, wq_t, wk_t, wv_t)

    return result, dist


def _reference(x, y, wq, wk, wv, num_heads):
    """Pure-JAX mirror of the PyTorch forward (eval mode)."""
    B, Nx, _ = x.shape
    Ny = y.shape[1]
    dim_k, dim_v = wq.shape[0], wv.shape[0]
    dk, dv = dim_k // num_heads, dim_v // num_heads
    q = (x @ wq.T).reshape(B, Nx, num_heads, dk).transpose(0, 2, 1, 3)
    k = (y @ wk.T).reshape(B, Ny, num_heads, dk).transpose(0, 2, 1, 3)
    v = (y @ wv.T).reshape(B, Ny, num_heads, dv).transpose(0, 2, 1, 3)
    dist = jnp.einsum("bhqc,bhkc->bhqk", q, k) * (1.0 / math.sqrt(dk))
    dist = jax.nn.softmax(dist, axis=-1)
    att = jnp.einsum("bhqk,bhkc->bhqc", dist, v)
    att = att.transpose(0, 2, 1, 3).reshape(B, Nx, dim_v)
    return att, dist


if __name__ == "__main__":
    # NOTE: the module-level constants in the spec (dim_k = dim_v = 80 with the
    # default num_heads = 6) violate the module's own assert (80 % 6 != 0), so
    # small consistent dims are used instead.
    B, Nx, Ny = 2, 8, 8            # batch, length_x, length_y
    Dx, Dy = 96, 64                # dim_in_x, dim_in_y
    dim_k = dim_v = 48             # divisible by num_heads = 6
    nh = 6

    key = jax.random.PRNGKey(0)
    kx, ky, km, kq, kk, kv = jax.random.split(key, 6)
    x = jax.random.normal(kx, (B, Nx, Dx), dtype=jnp.float32)
    y = jax.random.normal(ky, (B, Ny, Dy), dtype=jnp.float32)
    attn_mask = (jax.random.uniform(km, (B, Nx, Ny)) > 0.5).astype(jnp.float32)

    params = {
        # PyTorch nn.Linear layout: (out_features, in_features)
        "wq": 0.05 * jax.random.normal(kq, (dim_k, Dx), dtype=jnp.float32),
        "wk": 0.05 * jax.random.normal(kk, (dim_k, Dy), dtype=jnp.float32),
        "wv": 0.05 * jax.random.normal(kv, (dim_v, Dy), dtype=jnp.float32),
    }

    result, dist = multi_head_cross_self_attention(x, y, attn_mask, params,
                                                   num_heads=nh)
    result, dist = jax.block_until_ready((result, dist))

    ref_res, ref_dist = _reference(x, y, params["wq"], params["wk"],
                                   params["wv"], nh)
    assert result.shape == (B, Nx, dim_v)
    assert dist.shape == (B, nh, Nx, Ny)
    # Exact-divide softmax + f32 accumulation everywhere -> tight tolerance.
    assert jnp.allclose(result, ref_res, atol=1e-4, rtol=1e-4)
    assert jnp.allclose(dist, ref_dist, atol=1e-4, rtol=1e-4)

    print("KERNEL_OK")
</pallas_src>

<mosaic_0001>
module attributes {stable_mosaic.version = 11 : i64} {
  func.func @_mhcsa_kernel(%arg0: i32, %arg1: memref<16x96xf32, #tpu.memory_space<vmem>>, %arg2: memref<16x64xf32, #tpu.memory_space<vmem>>, %arg3: memref<96x48xf32, #tpu.memory_space<vmem>>, %arg4: memref<64x48xf32, #tpu.memory_space<vmem>>, %arg5: memref<64x48xf32, #tpu.memory_space<vmem>>, %arg6: memref<2x8x48xf32, #tpu.memory_space<vmem>>, %arg7: memref<2x6x8x8xf32, #tpu.memory_space<vmem>>) attributes {dimension_semantics = [#tpu.dimension_semantics<arbitrary>], iteration_bounds = array<i64: 1>, scalar_prefetch = 0 : i64, scratch_operands = 0 : i64, tpu.core_type = #tpu.core_type<tc>, window_params = [{transform_indices = @transform_0, window_bounds = array<i64: 16, 96>}, {transform_indices = @transform_1, window_bounds = array<i64: 16, 64>}, {pipeline_mode = #tpu.pipeline_mode<synchronous>, transform_indices = @transform_2, window_bounds = array<i64: 96, 48>}, {pipeline_mode = #tpu.pipeline_mode<synchronous>, transform_indices = @transform_3, window_bounds = array<i64: 64, 48>}, {pipeline_mode = #tpu.pipeline_mode<synchronous>, transform_indices = @transform_4, window_bounds = array<i64: 64, 48>}, {transform_indices = @transform_5, window_bounds = array<i64: 2, 8, 48>}, {transform_indices = @transform_6, window_bounds = array<i64: 2, 6, 8, 8>}]} {
    %c0 = arith.constant 0 : index
    %c0_0 = arith.constant 0 : index
    %0 = vector.load %arg1[%c0, %c0_0] : memref<16x96xf32, #tpu.memory_space<vmem>>, vector<16x96xf32>
    %c0_1 = arith.constant 0 : index
    %c0_2 = arith.constant 0 : index
    %1 = vector.load %arg3[%c0_1, %c0_2] : memref<96x48xf32, #tpu.memory_space<vmem>>, vector<96x48xf32>
    %cst = arith.constant dense<0.000000e+00> : vector<16x48xf32>
    %2 = tpu.matmul %0, %1, %cst {dimension_numbers = #tpu.dot_dimension_numbers<[1], [0], [0], [1], [0, 0, 1, 1], [], []>} : vector<16x96xf32>, vector<96x48xf32>, vector<16x48xf32> -> vector<16x48xf32>
    %c0_3 = arith.constant 0 : index
    %c0_4 = arith.constant 0 : index
    %3 = vector.load %arg2[%c0_3, %c0_4] : memref<16x64xf32, #tpu.memory_space<vmem>>, vector<16x64xf32>
    %c0_5 = arith.constant 0 : index
    %c0_6 = arith.constant 0 : index
    %4 = vector.load %arg4[%c0_5, %c0_6] : memref<64x48xf32, #tpu.memory_space<vmem>>, vector<64x48xf32>
    %cst_7 = arith.constant dense<0.000000e+00> : vector<16x48xf32>
    %5 = tpu.matmul %3, %4, %cst_7 {dimension_numbers = #tpu.dot_dimension_numbers<[1], [0], [0], [1], [0, 0, 1, 1], [], []>} : vector<16x64xf32>, vector<64x48xf32>, vector<16x48xf32> -> vector<16x48xf32>
    %c0_8 = arith.constant 0 : index
    %c0_9 = arith.constant 0 : index
    %6 = vector.load %arg2[%c0_8, %c0_9] : memref<16x64xf32, #tpu.memory_space<vmem>>, vector<16x64xf32>
    %c0_10 = arith.constant 0 : index
    %c0_11 = arith.constant 0 : index
    %7 = vector.load %arg5[%c0_10, %c0_11] : memref<64x48xf32, #tpu.memory_space<vmem>>, vector<64x48xf32>
    %cst_12 = arith.constant dense<0.000000e+00> : vector<16x48xf32>
    %8 = tpu.matmul %6, %7, %cst_12 {dimension_numbers = #tpu.dot_dimension_numbers<[1], [0], [0], [1], [0, 0, 1, 1], [], []>} : vector<16x64xf32>, vector<64x48xf32>, vector<16x48xf32> -> vector<16x48xf32>
    %9 = vector.shape_cast %2 : vector<16x48xf32> to vector<2x8x6x8xf32>
    %10 = tpu.transpose %9, [0, 2, 1, 3] : vector<2x8x6x8xf32> -> vector<2x6x8x8xf32>
    %11 = vector.shape_cast %10 : vector<2x6x8x8xf32> to vector<12x8x8xf32>
    %12 = vector.shape_cast %5 : vector<16x48xf32> to vector<2x8x6x8xf32>
    %13 = tpu.transpose %12, [0, 2, 1, 3] : vector<2x8x6x8xf32> -> vector<2x6x8x8xf32>
    %14 = vector.shape_cast %13 : vector<2x6x8x8xf32> to vector<12x8x8xf32>
    %15 = vector.shape_cast %8 : vector<16x48xf32> to vector<2x8x6x8xf32>
    %16 = tpu.transpose %15, [0, 2, 1, 3] : vector<2x8x6x8xf32> -> vector<2x6x8x8xf32>
    %17 = vector.shape_cast %16 : vector<2x6x8x8xf32> to vector<12x8x8xf32>
    "tpu.trace_start"() <{level = 10 : i32, message = "bqc,bkc->bqk"}> : () -> ()
    %cst_13 = arith.constant dense<0.000000e+00> : vector<12x8x8xf32>
    %18 = tpu.matmul %11, %14, %cst_13 {dimension_numbers = #tpu.dot_dimension_numbers<[2], [2], [1], [1], [0, 0, 0, 1, 1, 1], [0], [0]>} : vector<12x8x8xf32>, vector<12x8x8xf32>, vector<12x8x8xf32> -> vector<12x8x8xf32>
    "tpu.trace_stop"() : () -> ()
    %cst_14 = arith.constant dense<0xFF800000> : vector<12x8xf32>
    %19 = vector.multi_reduction <maximumf>, %18, %cst_14 [2] : vector<12x8x8xf32> to vector<12x8xf32>
    %20 = vector.shape_cast %19 : vector<12x8xf32> to vector<12x8x1xf32>
    %21 = vector.broadcast %20 : vector<12x8x1xf32> to vector<12x8x8xf32>
    %22 = arith.subf %18, %21 : vector<12x8x8xf32>
    %23 = math.exp %22 : vector<12x8x8xf32>
    %cst_15 = arith.constant dense<0.000000e+00> : vector<12x8xf32>
    %24 = vector.multi_reduction <add>, %23, %cst_15 [2] : vector<12x8x8xf32> to vector<12x8xf32>
    %25 = vector.shape_cast %24 : vector<12x8xf32> to vector<12x8x1xf32>
    %26 = vector.broadcast %25 : vector<12x8x1xf32> to vector<12x8x8xf32>
    %27 = arith.divf %23, %26 : vector<12x8x8xf32>
    %28 = vector.shape_cast %27 : vector<12x8x8xf32> to vector<2x6x8x8xf32>
    %c0_16 = arith.constant 0 : index
    %c0_17 = arith.constant 0 : index
    %c0_18 = arith.constant 0 : index
    %c0_19 = arith.constant 0 : index
    %29 = vector.load %arg7[%c0_16, %c0_17, %c0_18, %c0_19] : memref<2x6x8x8xf32, #tpu.memory_space<vmem>>, vector<2x6x8x8xf32>
    tpu.vector_store %arg7[%c0_16, %c0_17, %c0_18, %c0_19], %28 {strides = array<i32>} : memref<2x6x8x8xf32, #tpu.memory_space<vmem>>, vector<2x6x8x8xf32>,
    "tpu.trace_start"() <{level = 10 : i32, message = "bqk,bkd->bqd"}> : () -> ()
    %cst_20 = arith.constant dense<0.000000e+00> : vector<12x8x8xf32>
    %30 = tpu.matmul %27, %17, %cst_20 {dimension_numbers = #tpu.dot_dimension_numbers<[2], [1], [1], [2], [0, 0, 0, 1, 1, 2], [0], [0]>} : vector<12x8x8xf32>, vector<12x8x8xf32>, vector<12x8x8xf32> -> vector<12x8x8xf32>
    "tpu.trace_stop"() : () -> ()
    %31 = vector.shape_cast %30 : vector<12x8x8xf32> to vector<2x6x8x8xf32>
    %32 = tpu.transpose %31, [0, 2, 1, 3] : vector<2x6x8x8xf32> -> vector<2x8x6x8xf32>
    %33 = vector.shape_cast %32 : vector<2x8x6x8xf32> to vector<2x8x48xf32>
    %c0_21 = arith.constant 0 : index
    %c0_22 = arith.constant 0 : index
    %c0_23 = arith.constant 0 : index
    %34 = vector.load %arg6[%c0_21, %c0_22, %c0_23] : memref<2x8x48xf32, #tpu.memory_space<vmem>>, vector<2x8x48xf32>
    tpu.vector_store %arg6[%c0_21, %c0_22, %c0_23], %33 {strides = array<i32>} : memref<2x8x48xf32, #tpu.memory_space<vmem>>, vector<2x8x48xf32>,
    return
  }
  func.func @transform_0(%arg0: i32) -> (i32, i32) {
    %c0_i32 = arith.constant 0 : i32
    %c0_i32_0 = arith.constant 0 : i32
    return %arg0, %c0_i32 : i32, i32
  }
  func.func @transform_1(%arg0: i32) -> (i32, i32) {
    %c0_i32 = arith.constant 0 : i32
    %c0_i32_0 = arith.constant 0 : i32
    return %arg0, %c0_i32 : i32, i32
  }
  func.func @transform_2(%arg0: i32) -> (i32, i32) {
    %c0_i32 = arith.constant 0 : i32
    %c0_i32_0 = arith.constant 0 : i32
    %c0_i32_1 = arith.constant 0 : i32
    return %c0_i32, %c0_i32_0 : i32, i32
  }
  func.func @transform_3(%arg0: i32) -> (i32, i32) {
    %c0_i32 = arith.constant 0 : i32
    %c0_i32_0 = arith.constant 0 : i32
    %c0_i32_1 = arith.constant 0 : i32
    return %c0_i32, %c0_i32_0 : i32, i32
  }
  func.func @transform_4(%arg0: i32) -> (i32, i32) {
    %c0_i32 = arith.constant 0 : i32
    %c0_i32_0 = arith.constant 0 : i32
    %c0_i32_1 = arith.constant 0 : i32
    return %c0_i32, %c0_i32_0 : i32, i32
  }
  func.func @transform_5(%arg0: i32) -> (i32, i32, i32) {
    %c0_i32 = arith.constant 0 : i32
    %c0_i32_0 = arith.constant 0 : i32
    %c0_i32_1 = arith.constant 0 : i32
    return %arg0, %c0_i32, %c0_i32_0 : i32, i32, i32
  }
  func.func @transform_6(%arg0: i32) -> (i32, i32, i32, i32) {
    %c0_i32 = arith.constant 0 : i32
    %c0_i32_0 = arith.constant 0 : i32
    %c0_i32_1 = arith.constant 0 : i32
    %c0_i32_2 = arith.constant 0 : i32
    return %arg0, %c0_i32, %c0_i32_0, %c0_i32_1 : i32, i32, i32, i32
  }
}

</mosaic_0001>

<llo_original>
// kernel: tpu_custom_call.1
$region0: #{tpu_custom_call.1}
  #allocation0 [shape = 'u32[]', space=smem, size = 0x4, offset = 0x4, fixed_abs, tag = 'smem constant byte address 0x4 - core index']
  #allocation1 [shape = 'u32[72,128]{1,0:T(1,128)}', space=vmem, size = 0x9000, scoped, tag = 'internal scratch']
  %s0 = inlined_call_operand.vmem [shape: f32[16,96], index: 0, kind: input, shape index: {}]
  %s1 = inlined_call_operand.vmem [shape: f32[16,64], index: 1, kind: input, shape index: {}]
  %s2 = inlined_call_operand.vmem [shape: f32[96,48], index: 2, kind: input, shape index: {}]
  %s3 = inlined_call_operand.vmem [shape: f32[64,48], index: 3, kind: input, shape index: {}]
  %s4 = inlined_call_operand.vmem [shape: f32[64,48], index: 4, kind: input, shape index: {}]
  %s5 = inlined_call_operand.hbm [shape: f32[2,8,48], index: 5, kind: output, shape index: {0}]
  %s6 = inlined_call_operand.hbm [shape: f32[2,6,8,8], index: 6, kind: output, shape index: {1}]
  %7 = xla_tuple %s5, %s6
  %s8 = sld [smem:[#allocation0]]
  $region38: #{tpu_custom_call.1} parent=0
    _
  %s10 = ssub.s32 1, %s8
  %s11 = scalar_select 0, %s10, %s8
  $region1: #{tpu_custom_call.1} parent=0
    #allocation2 [shape = 'u8[8192]{0}', space=vmem, size = 0x2000, scoped, tag = 'output window, operand 0, single buffered']
    #allocation3 [shape = 's32[1]{0}', space=sflag, size = 0x4, scoped, tag = 'scoped memory for tpu_custom_call.1']
    #allocation4 [shape = 'u8[49152]{0}', space=vmem, size = 0xc000, scoped, tag = 'output window, operand 1, single buffered']
    #allocation5 [shape = 's32[1]{0}', space=sflag, size = 0x4, scoped, tag = 'scoped memory for tpu_custom_call.1']
    %12 = vsyncpa [#allocation3], 0
    %13 = vsyncpa [#allocation5], 0
    // Predicated region
    $region2: #{tpu_custom_call.1} parent=1 // pred_check
      _
    $region3: #{tpu_custom_call.1} parent=1 // pred_check_branch
      %15 = sbr.rel (0) target = $region5
    $region4: #{tpu_custom_call.1} parent=1 // pred_region
      _
    $region5: #{tpu_custom_call.1} parent=1 // pred_fallthru
      _
    // Predicated region
    $region6: #{tpu_custom_call.1} parent=1 // pred_check
      _
    $region7: #{tpu_custom_call.1} parent=1 // pred_check_branch
      %17 = sbr.rel (0) target = $region9
    $region8: #{tpu_custom_call.1} parent=1 // pred_region
      _
    $region9: #{tpu_custom_call.1} parent=1 // pred_fallthru
      _
    // Predicated region
    $region10: #{tpu_custom_call.1} parent=1 // pred_check
      _
    $region11: #{tpu_custom_call.1} parent=1 // pred_check_branch
      %19 = sbr.rel (0) target = $region13
    $region12: #{tpu_custom_call.1} parent=1 // pred_region
      _
    $region13: #{tpu_custom_call.1} parent=1 // pred_fallthru
      _
    // Predicated region
    $region14: #{tpu_custom_call.1} parent=1 // pred_check
      _
    $region15: #{tpu_custom_call.1} parent=1 // pred_check_branch
      %21 = sbr.rel (0) target = $region17
    $region16: #{tpu_custom_call.1} parent=1 // pred_region
      _
    $region17: #{tpu_custom_call.1} parent=1 // pred_fallthru
      _
    // Predicated region
    $region18: #{tpu_custom_call.1} parent=1 // pred_check
      _
    $region19: #{tpu_custom_call.1} parent=1 // pred_check_branch
      %23 = sbr.rel (0) target = $region21
    $region20: #{tpu_custom_call.1} parent=1 // pred_region
      _
    $region21: #{tpu_custom_call.1} parent=1 // pred_fallthru
      _
    %v24 = vld [vmem:[%s0] sm:$0xff]
    %v25 = vld [vmem:[%s0 + $0x8] sm:$0xff]
    %v26 = vld [vmem:[%s2] sm:$0xff]
    %v27 = vld [vmem:[%s2 + $0x8] sm:$0xff]
    %v28 = vld [vmem:[%s2 + $0x10] sm:$0xff]
    %v29 = vld [vmem:[%s2 + $0x18] sm:$0xff]
    %v30 = vld [vmem:[%s2 + $0x20] sm:$0xff]
    %v31 = vld [vmem:[%s2 + $0x28] sm:$0xff]
    %v32 = vld [vmem:[%s2 + $0x30] sm:$0xff]
    %v33 = vld [vmem:[%s2 + $0x38] sm:$0xff]
    %v34 = vld [vmem:[%s2 + $0x40] sm:$0xff]
    %v35 = vld [vmem:[%s2 + $0x48] sm:$0xff]
    %v36 = vld [vmem:[%s2 + $0x50] sm:$0xff]
    %v37 = vld [vmem:[%s2 + $0x58] sm:$0xff]
    %vm38 = vcmask 785408
    %v40 = vsel %vm38, %v24, 0
    %v43 = vsel %vm38, %v25, 0
    %45 = vmatpush.msra.mxu0 0.0
    %46 = vmatpush.msra.mxu0 0.0
    %47 = vmatpush.msra.mxu0 0.0
    %48 = vmatpush.msra.mxu0 0.0
    %49 = vmatpush.msra.mxu0 %v37
    %50 = vmatpush.msra.mxu0 %v36
    %51 = vmatpush.msra.mxu0 %v35
    %52 = vmatpush.msra.mxu0 %v34
    %53 = vmatpush.msra.mxu0 %v33
    %54 = vmatpush.msra.mxu0 %v32
    %55 = vmatpush.msra.mxu0 %v31
    %56 = vmatpush.msra.mxu0 %v30
    %57 = vmatpush.msra.mxu0 %v29
    %58 = vmatpush.msra.mxu0 %v28
    %59 = vmatpush.msra.mxu0 %v27
    %60 = vmatpush.msra.mxu0 %v26
    %61 = vmatmul.f32.gmra.mxu0 %v40
    %v62 = vpop.f32.mrf.mxu0
    %v63 = vadd.f32 0.0, %v62
    %64 = vmatmul.f32.gmra.mxu0 %v43
    %v65 = vpop.f32.mrf.mxu0
    %v66 = vadd.f32 0.0, %v65
    %67 = vdwg.mxu0
    %v68 = vld [vmem:[%s1] sm:$0xff]
    %v69 = vld [vmem:[%s1 + $0x8] sm:$0xff]
    %v70 = vld [vmem:[%s3] sm:$0xff]
    %v71 = vld [vmem:[%s3 + $0x8] sm:$0xff]
    %v72 = vld [vmem:[%s3 + $0x10] sm:$0xff]
    %v73 = vld [vmem:[%s3 + $0x18] sm:$0xff]
    %v74 = vld [vmem:[%s3 + $0x20] sm:$0xff]
    %v75 = vld [vmem:[%s3 + $0x28] sm:$0xff]
    %v76 = vld [vmem:[%s3 + $0x30] sm:$0xff]
    %v77 = vld [vmem:[%s3 + $0x38] sm:$0xff]
    %vm78 = vcmask 523264
    %v80 = vsel %vm78, %v68, 0
    %v83 = vsel %vm78, %v69, 0
    %85 = vmatpush.msra.mxu0 0.0
    %86 = vmatpush.msra.mxu0 0.0
    %87 = vmatpush.msra.mxu0 0.0
    %88 = vmatpush.msra.mxu0 0.0
    %89 = vmatpush.msra.mxu0 0.0
    %90 = vmatpush.msra.mxu0 0.0
    %91 = vmatpush.msra.mxu0 0.0
    %92 = vmatpush.msra.mxu0 0.0
    %93 = vmatpush.msra.mxu0 %v77
    %94 = vmatpush.msra.mxu0 %v76
    %95 = vmatpush.msra.mxu0 %v75
    %96 = vmatpush.msra.mxu0 %v74
    %97 = vmatpush.msra.mxu0 %v73
    %98 = vmatpush.msra.mxu0 %v72
    %99 = vmatpush.msra.mxu0 %v71
    %100 = vmatpush.msra.mxu0 %v70
    %101 = vmatmul.f32.gmra.mxu0 %v80
    %v102 = vpop.f32.mrf.mxu0
    %v103 = vadd.f32 0.0, %v102
    %104 = vmatmul.f32.gmra.mxu0 %v83
    %v105 = vpop.f32.mrf.mxu0
    %v106 = vadd.f32 0.0, %v105
    %107 = vdwg.mxu0
    %v108 = vld [vmem:[%s4] sm:$0xff]
    %v109 = vld [vmem:[%s4 + $0x8] sm:$0xff]
    %v110 = vld [vmem:[%s4 + $0x10] sm:$0xff]
    %v111 = vld [vmem:[%s4 + $0x18] sm:$0xff]
    %v112 = vld [vmem:[%s4 + $0x20] sm:$0xff]
    %v113 = vld [vmem:[%s4 + $0x28] sm:$0xff]
    %v114 = vld [vmem:[%s4 + $0x30] sm:$0xff]
    %v115 = vld [vmem:[%s4 + $0x38] sm:$0xff]
    %116 = vmatpush.msra.mxu0 0.0
    %117 = vmatpush.msra.mxu0 0.0
    %118 = vmatpush.msra.mxu0 0.0
    %119 = vmatpush.msra.mxu0 0.0
    %120 = vmatpush.msra.mxu0 0.0
    %121 = vmatpush.msra.mxu0 0.0
    %122 = vmatpush.msra.mxu0 0.0
    %123 = vmatpush.msra.mxu0 0.0
    %124 = vmatpush.msra.mxu0 %v115
    %125 = vmatpush.msra.mxu0 %v114
    %126 = vmatpush.msra.mxu0 %v113
    %127 = vmatpush.msra.mxu0 %v112
    %128 = vmatpush.msra.mxu0 %v111
    %129 = vmatpush.msra.mxu0 %v110
    %130 = vmatpush.msra.mxu0 %v109
    %131 = vmatpush.msra.mxu0 %v108
    %132 = vmatmul.f32.gmra.mxu0 %v80
    %v133 = vpop.f32.mrf.mxu0
    %v134 = vadd.f32 0.0, %v133
    %135 = vmatmul.f32.gmra.mxu0 %v83
    %v136 = vpop.f32.mrf.mxu0
    %v137 = vadd.f32 0.0, %v136
    %138 = vdwg.mxu0
    %141 = vrot.lane.b32.xlu0 %v63, 120
    %v142 = vpop.permute.xlu0 %141
    %143 = vrot.lane.b32.xlu0 %v66, 120
    %v144 = vpop.permute.xlu0 %143
    %147 = vrot.lane.b32.xlu0 %v63, 112
    %v148 = vpop.permute.xlu0 %147
    %149 = vrot.lane.b32.xlu0 %v66, 112
    %v150 = vpop.permute.xlu0 %149
    %153 = vrot.lane.b32.xlu0 %v63, 104
    %v154 = vpop.permute.xlu0 %153
    %155 = vrot.lane.b32.xlu0 %v66, 104
    %v156 = vpop.permute.xlu0 %155
    %159 = vrot.lane.b32.xlu0 %v63, 96
    %v160 = vpop.permute.xlu0 %159
    %161 = vrot.lane.b32.xlu0 %v66, 96
    %v162 = vpop.permute.xlu0 %161
    %165 = vrot.lane.b32.xlu0 %v63, 88
    %v166 = vpop.permute.xlu0 %165
    %167 = vrot.lane.b32.xlu0 %v66, 88
    %v168 = vpop.permute.xlu0 %167
    %v171 = vrot.slane %v148, 4
    %vm172 = vcmask 1047556
    %v173 = vsel %vm172, %v171, %v63
    %v174 = vrot.slane %v63, 4
    %v175 = vsel %vm172, %v148, %v174
    %v177 = vunpack.c.l.s4 1983009808
    %v178 = vunpack.c.0.s8 %v177
    %v179 = vperm.slane %v173, %v178
    %v181 = vunpack.c.l.s4 1983009808
    %v182 = vunpack.c.0.s8 %v181
    %v183 = vperm.slane %v175, %v182
    %v184 = vrot.slane %v154, 4
    %v185 = vsel %vm172, %v184, %v142
    %v186 = vrot.slane %v142, 4
    %v187 = vsel %vm172, %v154, %v186
    %v189 = vunpack.c.l.s4 1983009808
    %v190 = vunpack.c.0.s8 %v189
    %v191 = vperm.slane %v185, %v190
    %v193 = vunpack.c.l.s4 1983009808
    %v194 = vunpack.c.0.s8 %v193
    %v195 = vperm.slane %v187, %v194
    %v196 = vrot.slane %v160, 4
    %v197 = vsel %vm172, 0.0, %v196
    %v199 = vunpack.c.l.s4 1983009808
    %v200 = vunpack.c.0.s8 %v199
    %v201 = vperm.slane %v160, %v200
    %v203 = vunpack.c.l.s4 1983009808
    %v204 = vunpack.c.0.s8 %v203
    %v205 = vperm.slane %v197, %v204
    %v206 = vrot.slane %v166, 4
    %v207 = vsel %vm172, 0.0, %v206
    %v209 = vunpack.c.l.s4 1983009808
    %v210 = vunpack.c.0.s8 %v209
    %v211 = vperm.slane %v166, %v210
    %v213 = vunpack.c.l.s4 1983009808
    %v214 = vunpack.c.0.s8 %v213
    %v215 = vperm.slane %v207, %v214
    %v216 = vrot.slane %v191, 4
    %v217 = vsel %vm172, %v216, %v179
    %v218 = vrot.slane %v179, 4
    %v219 = vsel %vm172, %v191, %v218
    %v221 = vunpack.c.l.s4 1934713408
    %v222 = vunpack.c.0.s8 %v221
    %v223 = vperm.slane %v217, %v222
    %v225 = vunpack.c.l.s4 1934713408
    %v226 = vunpack.c.0.s8 %v225
    %v227 = vperm.slane %v219, %v226
    %v228 = vrot.slane %v195, 4
    %v229 = vsel %vm172, %v228, %v183
    %v230 = vrot.slane %v183, 4
    %v231 = vsel %vm172, %v195, %v230
    %v233 = vunpack.c.l.s4 1934713408
    %v234 = vunpack.c.0.s8 %v233
    %v235 = vperm.slane %v229, %v234
    %v237 = vunpack.c.l.s4 1934713408
    %v238 = vunpack.c.0.s8 %v237
    %v239 = vperm.slane %v231, %v238
    %v240 = vrot.slane %v211, 4
    %v241 = vsel %vm172, %v240, %v201
    %v242 = vrot.slane %v201, 4
    %v243 = vsel %vm172, %v211, %v242
    %v245 = vunpack.c.l.s4 1934713408
    %v246 = vunpack.c.0.s8 %v245
    %v247 = vperm.slane %v241, %v246
    %v249 = vunpack.c.l.s4 1934713408
    %v250 = vunpack.c.0.s8 %v249
    %v251 = vperm.slane %v243, %v250
    %v252 = vrot.slane %v215, 4
    %v253 = vsel %vm172, %v252, %v205
    %v254 = vrot.slane %v205, 4
    %v255 = vsel %vm172, %v215, %v254
    %v257 = vunpack.c.l.s4 1934713408
    %v258 = vunpack.c.0.s8 %v257
    %v259 = vperm.slane %v253, %v258
    %v261 = vunpack.c.l.s4 1934713408
    %v262 = vunpack.c.0.s8 %v261
    %v263 = vperm.slane %v255, %v262
    %v264 = vrot.slane %v247, 4
    %v265 = vsel %vm172, %v264, %v223
    %v266 = vrot.slane %v223, 4
    %v267 = vsel %vm172, %v247, %v266
    %v268 = vrot.slane %v251, 4
    %v269 = vsel %vm172, %v268, %v227
    %v270 = vrot.slane %v227, 4
    %v271 = vsel %vm172, %v251, %v270
    %v272 = vrot.slane %v259, 4
    %v273 = vsel %vm172, %v272, %v235
    %v274 = vrot.slane %v235, 4
    %v275 = vsel %vm172, %v259, %v274
    %v276 = vrot.slane %v263, 4
    %v277 = vsel %vm172, %v276, %v239
    %v278 = vrot.slane %v239, 4
    %v279 = vsel %vm172, %v263, %v278
    %v280 = vrot.slane %v150, 4
    %v281 = vsel %vm172, %v280, %v66
    %v282 = vrot.slane %v66, 4
    %v283 = vsel %vm172, %v150, %v282
    %v285 = vunpack.c.l.s4 1983009808
    %v286 = vunpack.c.0.s8 %v285
    %v287 = vperm.slane %v281, %v286
    %v289 = vunpack.c.l.s4 1983009808
    %v290 = vunpack.c.0.s8 %v289
    %v291 = vperm.slane %v283, %v290
    %v292 = vrot.slane %v156, 4
    %v293 = vsel %vm172, %v292, %v144
    %v294 = vrot.slane %v144, 4
    %v295 = vsel %vm172, %v156, %v294
    %v297 = vunpack.c.l.s4 1983009808
    %v298 = vunpack.c.0.s8 %v297
    %v299 = vperm.slane %v293, %v298
    %v301 = vunpack.c.l.s4 1983009808
    %v302 = vunpack.c.0.s8 %v301
    %v303 = vperm.slane %v295, %v302
    %v304 = vrot.slane %v162, 4
    %v305 = vsel %vm172, 0.0, %v304
    %v307 = vunpack.c.l.s4 1983009808
    %v308 = vunpack.c.0.s8 %v307
    %v309 = vperm.slane %v162, %v308
    %v311 = vunpack.c.l.s4 1983009808
    %v312 = vunpack.c.0.s8 %v311
    %v313 = vperm.slane %v305, %v312
    %v314 = vrot.slane %v168, 4
    %v315 = vsel %vm172, 0.0, %v314
    %v317 = vunpack.c.l.s4 1983009808
    %v318 = vunpack.c.0.s8 %v317
    %v319 = vperm.slane %v168, %v318
    %v321 = vunpack.c.l.s4 1983009808
    %v322 = vunpack.c.0.s8 %v321
    %v323 = vperm.slane %v315, %v322
    %v324 = vrot.slane %v299, 4
    %v325 = vsel %vm172, %v324, %v287
    %v326 = vrot.slane %v287, 4
    %v327 = vsel %vm172, %v299, %v326
    %v329 = vunpack.c.l.s4 1934713408
    %v330 = vunpack.c.0.s8 %v329
    %v331 = vperm.slane %v325, %v330
    %v333 = vunpack.c.l.s4 1934713408
    %v334 = vunpack.c.0.s8 %v333
    %v335 = vperm.slane %v327, %v334
    %v336 = vrot.slane %v303, 4
    %v337 = vsel %vm172, %v336, %v291
    %v338 = vrot.slane %v291, 4
    %v339 = vsel %vm172, %v303, %v338
    %v341 = vunpack.c.l.s4 1934713408
    %v342 = vunpack.c.0.s8 %v341
    %v343 = vperm.slane %v337, %v342
    %v345 = vunpack.c.l.s4 1934713408
    %v346 = vunpack.c.0.s8 %v345
    %v347 = vperm.slane %v339, %v346
    %v348 = vrot.slane %v319, 4
    %v349 = vsel %vm172, %v348, %v309
    %v350 = vrot.slane %v309, 4
    %v351 = vsel %vm172, %v319, %v350
    %v353 = vunpack.c.l.s4 1934713408
    %v354 = vunpack.c.0.s8 %v353
    %v355 = vperm.slane %v349, %v354
    %v357 = vunpack.c.l.s4 1934713408
    %v358 = vunpack.c.0.s8 %v357
    %v359 = vperm.slane %v351, %v358
    %v360 = vrot.slane %v323, 4
    %v361 = vsel %vm172, %v360, %v313
    %v362 = vrot.slane %v313, 4
    %v363 = vsel %vm172, %v323, %v362
    %v365 = vunpack.c.l.s4 1934713408
    %v366 = vunpack.c.0.s8 %v365
    %v367 = vperm.slane %v361, %v366
    %v369 = vunpack.c.l.s4 1934713408
    %v370 = vunpack.c.0.s8 %v369
    %v371 = vperm.slane %v363, %v370
    %v372 = vrot.slane %v355, 4
    %v373 = vsel %vm172, %v372, %v331
    %v374 = vrot.slane %v331, 4
    %v375 = vsel %vm172, %v355, %v374
    %v376 = vrot.slane %v359, 4
    %v377 = vsel %vm172, %v376, %v335
    %v378 = vrot.slane %v335, 4
    %v379 = vsel %vm172, %v359, %v378
    %v380 = vrot.slane %v367, 4
    %v381 = vsel %vm172, %v380, %v343
    %v382 = vrot.slane %v343, 4
    %v383 = vsel %vm172, %v367, %v382
    %v384 = vrot.slane %v371, 4
    %v385 = vsel %vm172, %v384, %v347
    %v386 = vrot.slane %v347, 4
    %v387 = vsel %vm172, %v371, %v386
    %v388 = vrot.slane %v269, 4
    %v389 = vsel %vm172, %v388, %v265
    %v390 = vrot.slane %v265, 4
    %v391 = vsel %vm172, %v269, %v390
    %v393 = vunpack.c.l.s4 1983009808
    %v394 = vunpack.c.0.s8 %v393
    %v395 = vperm.slane %v389, %v394
    %v397 = vunpack.c.l.s4 1983009808
    %v398 = vunpack.c.0.s8 %v397
    %v399 = vperm.slane %v391, %v398
    %v400 = vrot.slane %v271, 4
    %v401 = vsel %vm172, %v400, %v267
    %v402 = vrot.slane %v267, 4
    %v403 = vsel %vm172, %v271, %v402
    %v405 = vunpack.c.l.s4 1983009808
    %v406 = vunpack.c.0.s8 %v405
    %v407 = vperm.slane %v401, %v406
    %v409 = vunpack.c.l.s4 1983009808
    %v410 = vunpack.c.0.s8 %v409
    %v411 = vperm.slane %v403, %v410
    %v412 = vrot.slane %v277, 4
    %v413 = vsel %vm172, %v412, %v273
    %v414 = vrot.slane %v273, 4
    %v415 = vsel %vm172, %v277, %v414
    %v417 = vunpack.c.l.s4 1983009808
    %v418 = vunpack.c.0.s8 %v417
    %v419 = vperm.slane %v413, %v418
    %v421 = vunpack.c.l.s4 1983009808
    %v422 = vunpack.c.0.s8 %v421
    %v423 = vperm.slane %v415, %v422
    %v424 = vrot.slane %v279, 4
    %v425 = vsel %vm172, %v424, %v275
    %v426 = vrot.slane %v275, 4
    %v427 = vsel %vm172, %v279, %v426
    %v429 = vunpack.c.l.s4 1983009808
    %v430 = vunpack.c.0.s8 %v429
    %v431 = vperm.slane %v425, %v430
    %v433 = vunpack.c.l.s4 1983009808
    %v434 = vunpack.c.0.s8 %v433
    %v435 = vperm.slane %v427, %v434
    %v436 = vrot.slane %v407, 4
    %v437 = vsel %vm172, %v436, %v395
    %v438 = vrot.slane %v395, 4
    %v439 = vsel %vm172, %v407, %v438
    %v441 = vunpack.c.l.s4 1934713408
    %v442 = vunpack.c.0.s8 %v441
    %v443 = vperm.slane %v437, %v442
    %v445 = vunpack.c.l.s4 1934713408
    %v446 = vunpack.c.0.s8 %v445
    %v447 = vperm.slane %v439, %v446
    %v448 = vrot.slane %v411, 4
    %v449 = vsel %vm172, %v448, %v399
    %v451 = vunpack.c.l.s4 1934713408
    %v452 = vunpack.c.0.s8 %v451
    %v453 = vperm.slane %v449, %v452
    %v454 = vrot.slane %v431, 4
    %v455 = vsel %vm172, %v454, %v419
    %v456 = vrot.slane %v419, 4
    %v457 = vsel %vm172, %v431, %v456
    %v459 = vunpack.c.l.s4 1934713408
    %v460 = vunpack.c.0.s8 %v459
    %v461 = vperm.slane %v455, %v460
    %v463 = vunpack.c.l.s4 1934713408
    %v464 = vunpack.c.0.s8 %v463
    %v465 = vperm.slane %v457, %v464
    %v466 = vrot.slane %v435, 4
    %v467 = vsel %vm172, %v466, %v423
    %v469 = vunpack.c.l.s4 1934713408
    %v470 = vunpack.c.0.s8 %v469
    %v471 = vperm.slane %v467, %v470
    %v472 = vrot.slane %v461, 4
    %v473 = vsel %vm172, %v472, %v443
    %v474 = vrot.slane %v443, 4
    %v475 = vsel %vm172, %v461, %v474
    %v476 = vrot.slane %v465, 4
    %v477 = vsel %vm172, %v476, %v447
    %v478 = vrot.slane %v447, 4
    %v479 = vsel %vm172, %v465, %v478
    %v480 = vrot.slane %v471, 4
    %v481 = vsel %vm172, %v480, %v453
    %v482 = vrot.slane %v453, 4
    %v483 = vsel %vm172, %v471, %v482
    %v484 = vrot.slane %v377, 4
    %v485 = vsel %vm172, %v484, %v373
    %v486 = vrot.slane %v373, 4
    %v487 = vsel %vm172, %v377, %v486
    %v489 = vunpack.c.l.s4 1983009808
    %v490 = vunpack.c.0.s8 %v489
    %v491 = vperm.slane %v485, %v490
    %v493 = vunpack.c.l.s4 1983009808
    %v494 = vunpack.c.0.s8 %v493
    %v495 = vperm.slane %v487, %v494
    %v496 = vrot.slane %v379, 4
    %v497 = vsel %vm172, %v496, %v375
    %v498 = vrot.slane %v375, 4
    %v499 = vsel %vm172, %v379, %v498
    %v501 = vunpack.c.l.s4 1983009808
    %v502 = vunpack.c.0.s8 %v501
    %v503 = vperm.slane %v497, %v502
    %v505 = vunpack.c.l.s4 1983009808
    %v506 = vunpack.c.0.s8 %v505
    %v507 = vperm.slane %v499, %v506
    %v508 = vrot.slane %v385, 4
    %v509 = vsel %vm172, %v508, %v381
    %v510 = vrot.slane %v381, 4
    %v511 = vsel %vm172, %v385, %v510
    %v513 = vunpack.c.l.s4 1983009808
    %v514 = vunpack.c.0.s8 %v513
    %v515 = vperm.slane %v509, %v514
    %v517 = vunpack.c.l.s4 1983009808
    %v518 = vunpack.c.0.s8 %v517
    %v519 = vperm.slane %v511, %v518
    %v520 = vrot.slane %v387, 4
    %v521 = vsel %vm172, %v520, %v383
    %v522 = vrot.slane %v383, 4
    %v523 = vsel %vm172, %v387, %v522
    %v525 = vunpack.c.l.s4 1983009808
    %v526 = vunpack.c.0.s8 %v525
    %v527 = vperm.slane %v521, %v526
    %v529 = vunpack.c.l.s4 1983009808
    %v530 = vunpack.c.0.s8 %v529
    %v531 = vperm.slane %v523, %v530
    %v532 = vrot.slane %v503, 4
    %v533 = vsel %vm172, %v532, %v491
    %v534 = vrot.slane %v491, 4
    %v535 = vsel %vm172, %v503, %v534
    %v537 = vunpack.c.l.s4 1934713408
    %v538 = vunpack.c.0.s8 %v537
    %v539 = vperm.slane %v533, %v538
    %v541 = vunpack.c.l.s4 1934713408
    %v542 = vunpack.c.0.s8 %v541
    %v543 = vperm.slane %v535, %v542
    %v544 = vrot.slane %v507, 4
    %v545 = vsel %vm172, %v544, %v495
    %v547 = vunpack.c.l.s4 1934713408
    %v548 = vunpack.c.0.s8 %v547
    %v549 = vperm.slane %v545, %v548
    %v550 = vrot.slane %v527, 4
    %v551 = vsel %vm172, %v550, %v515
    %v552 = vrot.slane %v515, 4
    %v553 = vsel %vm172, %v527, %v552
    %v555 = vunpack.c.l.s4 1934713408
    %v556 = vunpack.c.0.s8 %v555
    %v557 = vperm.slane %v551, %v556
    %v559 = vunpack.c.l.s4 1934713408
    %v560 = vunpack.c.0.s8 %v559
    %v561 = vperm.slane %v553, %v560
    %v562 = vrot.slane %v531, 4
    %v563 = vsel %vm172, %v562, %v519
    %v565 = vunpack.c.l.s4 1934713408
    %v566 = vunpack.c.0.s8 %v565
    %v567 = vperm.slane %v563, %v566
    %v568 = vrot.slane %v557, 4
    %v569 = vsel %vm172, %v568, %v539
    %v570 = vrot.slane %v539, 4
    %v571 = vsel %vm172, %v557, %v570
    %v572 = vrot.slane %v561, 4
    %v573 = vsel %vm172, %v572, %v543
    %v574 = vrot.slane %v543, 4
    %v575 = vsel %vm172, %v561, %v574
    %v576 = vrot.slane %v567, 4
    %v577 = vsel %vm172, %v576, %v549
    %v578 = vrot.slane %v549, 4
    %v579 = vsel %vm172, %v567, %v578
    %582 = vrot.lane.b32.xlu0 %v103, 120
    %v583 = vpop.permute.xlu0 %582
    %584 = vrot.lane.b32.xlu0 %v106, 120
    %v585 = vpop.permute.xlu0 %584
    %588 = vrot.lane.b32.xlu0 %v103, 112
    %v589 = vpop.permute.xlu0 %588
    %590 = vrot.lane.b32.xlu0 %v106, 112
    %v591 = vpop.permute.xlu0 %590
    %594 = vrot.lane.b32.xlu0 %v103, 104
    %v595 = vpop.permute.xlu0 %594
    %596 = vrot.lane.b32.xlu0 %v106, 104
    %v597 = vpop.permute.xlu0 %596
    %600 = vrot.lane.b32.xlu0 %v103, 96
    %v601 = vpop.permute.xlu0 %600
    %602 = vrot.lane.b32.xlu0 %v106, 96
    %v603 = vpop.permute.xlu0 %602
    %606 = vrot.lane.b32.xlu0 %v103, 88
    %v607 = vpop.permute.xlu0 %606
    %608 = vrot.lane.b32.xlu0 %v106, 88
    %v609 = vpop.permute.xlu0 %608
    %v612 = vrot.slane %v589, 4
    %v613 = vsel %vm172, %v612, %v103
    %v614 = vrot.slane %v103, 4
    %v615 = vsel %vm172, %v589, %v614
    %v617 = vunpack.c.l.s4 1983009808
    %v618 = vunpack.c.0.s8 %v617
    %v619 = vperm.slane %v613, %v618
    %v621 = vunpack.c.l.s4 1983009808
    %v622 = vunpack.c.0.s8 %v621
    %v623 = vperm.slane %v615, %v622
    %v624 = vrot.slane %v595, 4
    %v625 = vsel %vm172, %v624, %v583
    %v626 = vrot.slane %v583, 4
    %v627 = vsel %vm172, %v595, %v626
    %v629 = vunpack.c.l.s4 1983009808
    %v630 = vunpack.c.0.s8 %v629
    %v631 = vperm.slane %v625, %v630
    %v633 = vunpack.c.l.s4 1983009808
    %v634 = vunpack.c.0.s8 %v633
    %v635 = vperm.slane %v627, %v634
    %v636 = vrot.slane %v601, 4
    %v637 = vsel %vm172, 0.0, %v636
    %v639 = vunpack.c.l.s4 1983009808
    %v640 = vunpack.c.0.s8 %v639
    %v641 = vperm.slane %v601, %v640
    %v643 = vunpack.c.l.s4 1983009808
    %v644 = vunpack.c.0.s8 %v643
    %v645 = vperm.slane %v637, %v644
    %v646 = vrot.slane %v607, 4
    %v647 = vsel %vm172, 0.0, %v646
    %v649 = vunpack.c.l.s4 1983009808
    %v650 = vunpack.c.0.s8 %v649
    %v651 = vperm.slane %v607, %v650
    %v653 = vunpack.c.l.s4 1983009808
    %v654 = vunpack.c.0.s8 %v653
    %v655 = vperm.slane %v647, %v654
    %v656 = vrot.slane %v631, 4
    %v657 = vsel %vm172, %v656, %v619
    %v658 = vrot.slane %v619, 4
    %v659 = vsel %vm172, %v631, %v658
    %v661 = vunpack.c.l.s4 1934713408
    %v662 = vunpack.c.0.s8 %v661
    %v663 = vperm.slane %v657, %v662
    %v665 = vunpack.c.l.s4 1934713408
    %v666 = vunpack.c.0.s8 %v665
    %v667 = vperm.slane %v659, %v666
    %v668 = vrot.slane %v635, 4
    %v669 = vsel %vm172, %v668, %v623
    %v670 = vrot.slane %v623, 4
    %v671 = vsel %vm172, %v635, %v670
    %v673 = vunpack.c.l.s4 1934713408
    %v674 = vunpack.c.0.s8 %v673
    %v675 = vperm.slane %v669, %v674
    %v677 = vunpack.c.l.s4 1934713408
    %v678 = vunpack.c.0.s8 %v677
    %v679 = vperm.slane %v671, %v678
    %v680 = vrot.slane %v651, 4
    %v681 = vsel %vm172, %v680, %v641
    %v682 = vrot.slane %v641, 4
    %v683 = vsel %vm172, %v651, %v682
    %v685 = vunpack.c.l.s4 1934713408
    %v686 = vunpack.c.0.s8 %v685
    %v687 = vperm.slane %v681, %v686
    %v689 = vunpack.c.l.s4 1934713408
    %v690 = vunpack.c.0.s8 %v689
    %v691 = vperm.slane %v683, %v690
    %v692 = vrot.slane %v655, 4
    %v693 = vsel %vm172, %v692, %v645
    %v694 = vrot.slane %v645, 4
    %v695 = vsel %vm172, %v655, %v694
    %v697 = vunpack.c.l.s4 1934713408
    %v698 = vunpack.c.0.s8 %v697
    %v699 = vperm.slane %v693, %v698
    %v701 = vunpack.c.l.s4 1934713408
    %v702 = vunpack.c.0.s8 %v701
    %v703 = vperm.slane %v695, %v702
    %v704 = vrot.slane %v687, 4
    %v705 = vsel %vm172, %v704, %v663
    %v706 = vrot.slane %v663, 4
    %v707 = vsel %vm172, %v687, %v706
    %v708 = vrot.slane %v691, 4
    %v709 = vsel %vm172, %v708, %v667
    %v710 = vrot.slane %v667, 4
    %v711 = vsel %vm172, %v691, %v710
    %v712 = vrot.slane %v699, 4
    %v713 = vsel %vm172, %v712, %v675
    %v714 = vrot.slane %v675, 4
    %v715 = vsel %vm172, %v699, %v714
    %v716 = vrot.slane %v703, 4
    %v717 = vsel %vm172, %v716, %v679
    %v718 = vrot.slane %v679, 4
    %v719 = vsel %vm172, %v703, %v718
    %v720 = vrot.slane %v591, 4
    %v721 = vsel %vm172, %v720, %v106
    %v722 = vrot.slane %v106, 4
    %v723 = vsel %vm172, %v591, %v722
    %v725 = vunpack.c.l.s4 1983009808
    %v726 = vunpack.c.0.s8 %v725
    %v727 = vperm.slane %v721, %v726
    %v729 = vunpack.c.l.s4 1983009808
    %v730 = vunpack.c.0.s8 %v729
    %v731 = vperm.slane %v723, %v730
    %v732 = vrot.slane %v597, 4
    %v733 = vsel %vm172, %v732, %v585
    %v734 = vrot.slane %v585, 4
    %v735 = vsel %vm172, %v597, %v734
    %v737 = vunpack.c.l.s4 1983009808
    %v738 = vunpack.c.0.s8 %v737
    %v739 = vperm.slane %v733, %v738
    %v741 = vunpack.c.l.s4 1983009808
    %v742 = vunpack.c.0.s8 %v741
    %v743 = vperm.slane %v735, %v742
    %v744 = vrot.slane %v603, 4
    %v745 = vsel %vm172, 0.0, %v744
    %v747 = vunpack.c.l.s4 1983009808
    %v748 = vunpack.c.0.s8 %v747
    %v749 = vperm.slane %v603, %v748
    %v751 = vunpack.c.l.s4 1983009808
    %v752 = vunpack.c.0.s8 %v751
    %v753 = vperm.slane %v745, %v752
    %v754 = vrot.slane %v609, 4
    %v755 = vsel %vm172, 0.0, %v754
    %v757 = vunpack.c.l.s4 1983009808
    %v758 = vunpack.c.0.s8 %v757
    %v759 = vperm.slane %v609, %v758
    %v761 = vunpack.c.l.s4 1983009808
    %v762 = vunpack.c.0.s8 %v761
    %v763 = vperm.slane %v755, %v762
    %v764 = vrot.slane %v739, 4
    %v765 = vsel %vm172, %v764, %v727
    %v766 = vrot.slane %v727, 4
    %v767 = vsel %vm172, %v739, %v766
    %v769 = vunpack.c.l.s4 1934713408
    %v770 = vunpack.c.0.s8 %v769
    %v771 = vperm.slane %v765, %v770
    %v773 = vunpack.c.l.s4 1934713408
    %v774 = vunpack.c.0.s8 %v773
    %v775 = vperm.slane %v767, %v774
    %v776 = vrot.slane %v743, 4
    %v777 = vsel %vm172, %v776, %v731
    %v778 = vrot.slane %v731, 4
    %v779 = vsel %vm172, %v743, %v778
    %v781 = vunpack.c.l.s4 1934713408
    %v782 = vunpack.c.0.s8 %v781
    %v783 = vperm.slane %v777, %v782
    %v785 = vunpack.c.l.s4 1934713408
    %v786 = vunpack.c.0.s8 %v785
    %v787 = vperm.slane %v779, %v786
    %v788 = vrot.slane %v759, 4
    %v789 = vsel %vm172, %v788, %v749
    %v790 = vrot.slane %v749, 4
    %v791 = vsel %vm172, %v759, %v790
    %v793 = vunpack.c.l.s4 1934713408
    %v794 = vunpack.c.0.s8 %v793
    %v795 = vperm.slane %v789, %v794
    %v797 = vunpack.c.l.s4 1934713408
    %v798 = vunpack.c.0.s8 %v797
    %v799 = vperm.slane %v791, %v798
    %v800 = vrot.slane %v763, 4
    %v801 = vsel %vm172, %v800, %v753
    %v802 = vrot.slane %v753, 4
    %v803 = vsel %vm172, %v763, %v802
    %v805 = vunpack.c.l.s4 1934713408
    %v806 = vunpack.c.0.s8 %v805
    %v807 = vperm.slane %v801, %v806
    %v809 = vunpack.c.l.s4 1934713408
    %v810 = vunpack.c.0.s8 %v809
    %v811 = vperm.slane %v803, %v810
    %v812 = vrot.slane %v795, 4
    %v813 = vsel %vm172, %v812, %v771
    %v814 = vrot.slane %v771, 4
    %v815 = vsel %vm172, %v795, %v814
    %v816 = vrot.slane %v799, 4
    %v817 = vsel %vm172, %v816, %v775
    %v818 = vrot.slane %v775, 4
    %v819 = vsel %vm172, %v799, %v818
    %v820 = vrot.slane %v807, 4
    %v821 = vsel %vm172, %v820, %v783
    %v822 = vrot.slane %v783, 4
    %v823 = vsel %vm172, %v807, %v822
    %v824 = vrot.slane %v811, 4
    %v825 = vsel %vm172, %v824, %v787
    %v826 = vrot.slane %v787, 4
    %v827 = vsel %vm172, %v811, %v826
    %v828 = vrot.slane %v709, 4
    %v829 = vsel %vm172, %v828, %v705
    %v830 = vrot.slane %v705, 4
    %v831 = vsel %vm172, %v709, %v830
    %v833 = vunpack.c.l.s4 1983009808
    %v834 = vunpack.c.0.s8 %v833
    %v835 = vperm.slane %v829, %v834
    %v837 = vunpack.c.l.s4 1983009808
    %v838 = vunpack.c.0.s8 %v837
    %v839 = vperm.slane %v831, %v838
    %v840 = vrot.slane %v711, 4
    %v841 = vsel %vm172, %v840, %v707
    %v842 = vrot.slane %v707, 4
    %v843 = vsel %vm172, %v711, %v842
    %v845 = vunpack.c.l.s4 1983009808
    %v846 = vunpack.c.0.s8 %v845
    %v847 = vperm.slane %v841, %v846
    %v849 = vunpack.c.l.s4 1983009808
    %v850 = vunpack.c.0.s8 %v849
    %v851 = vperm.slane %v843, %v850
    %v852 = vrot.slane %v717, 4
    %v853 = vsel %vm172, %v852, %v713
    %v854 = vrot.slane %v713, 4
    %v855 = vsel %vm172, %v717, %v854
    %v857 = vunpack.c.l.s4 1983009808
    %v858 = vunpack.c.0.s8 %v857
    %v859 = vperm.slane %v853, %v858
    %v861 = vunpack.c.l.s4 1983009808
    %v862 = vunpack.c.0.s8 %v861
    %v863 = vperm.slane %v855, %v862
    %v864 = vrot.slane %v719, 4
    %v865 = vsel %vm172, %v864, %v715
    %v866 = vrot.slane %v715, 4
    %v867 = vsel %vm172, %v719, %v866
    %v869 = vunpack.c.l.s4 1983009808
    %v870 = vunpack.c.0.s8 %v869
    %v871 = vperm.slane %v865, %v870
    %v873 = vunpack.c.l.s4 1983009808
    %v874 = vunpack.c.0.s8 %v873
    %v875 = vperm.slane %v867, %v874
    %v876 = vrot.slane %v847, 4
    %v877 = vsel %vm172, %v876, %v835
    %v878 = vrot.slane %v835, 4
    %v879 = vsel %vm172, %v847, %v878
    %v881 = vunpack.c.l.s4 1934713408
    %v882 = vunpack.c.0.s8 %v881
    %v883 = vperm.slane %v877, %v882
    %v885 = vunpack.c.l.s4 1934713408
    %v886 = vunpack.c.0.s8 %v885
    %v887 = vperm.slane %v879, %v886
    %v888 = vrot.slane %v851, 4
    %v889 = vsel %vm172, %v888, %v839
    %v891 = vunpack.c.l.s4 1934713408
    %v892 = vunpack.c.0.s8 %v891
    %v893 = vperm.slane %v889, %v892
    %v894 = vrot.slane %v871, 4
    %v895 = vsel %vm172, %v894, %v859
    %v896 = vrot.slane %v859, 4
    %v897 = vsel %vm172, %v871, %v896
    %v899 = vunpack.c.l.s4 1934713408
    %v900 = vunpack.c.0.s8 %v899
    %v901 = vperm.slane %v895, %v900
    %v903 = vunpack.c.l.s4 1934713408
    %v904 = vunpack.c.0.s8 %v903
    %v905 = vperm.slane %v897, %v904
    %v906 = vrot.slane %v875, 4
    %v907 = vsel %vm172, %v906, %v863
    %v909 = vunpack.c.l.s4 1934713408
    %v910 = vunpack.c.0.s8 %v909
    %v911 = vperm.slane %v907, %v910
    %v912 = vrot.slane %v901, 4
    %v913 = vsel %vm172, %v912, %v883
    %v914 = vrot.slane %v883, 4
    %v915 = vsel %vm172, %v901, %v914
    %v916 = vrot.slane %v905, 4
    %v917 = vsel %vm172, %v916, %v887
    %v918 = vrot.slane %v887, 4
    %v919 = vsel %vm172, %v905, %v918
    %v920 = vrot.slane %v911, 4
    %v921 = vsel %vm172, %v920, %v893
    %v922 = vrot.slane %v893, 4
    %v923 = vsel %vm172, %v911, %v922
    %v924 = vrot.slane %v817, 4
    %v925 = vsel %vm172, %v924, %v813
    %v926 = vrot.slane %v813, 4
    %v927 = vsel %vm172, %v817, %v926
    %v929 = vunpack.c.l.s4 1983009808
    %v930 = vunpack.c.0.s8 %v929
    %v931 = vperm.slane %v925, %v930
    %v933 = vunpack.c.l.s4 1983009808
    %v934 = vunpack.c.0.s8 %v933
    %v935 = vperm.slane %v927, %v934
    %v936 = vrot.slane %v819, 4
    %v937 = vsel %vm172, %v936, %v815
    %v938 = vrot.slane %v815, 4
    %v939 = vsel %vm172, %v819, %v938
    %v941 = vunpack.c.l.s4 1983009808
    %v942 = vunpack.c.0.s8 %v941
    %v943 = vperm.slane %v937, %v942
    %v945 = vunpack.c.l.s4 1983009808
    %v946 = vunpack.c.0.s8 %v945
    %v947 = vperm.slane %v939, %v946
    %v948 = vrot.slane %v825, 4
    %v949 = vsel %vm172, %v948, %v821
    %v950 = vrot.slane %v821, 4
    %v951 = vsel %vm172, %v825, %v950
    %v953 = vunpack.c.l.s4 1983009808
    %v954 = vunpack.c.0.s8 %v953
    %v955 = vperm.slane %v949, %v954
    %v957 = vunpack.c.l.s4 1983009808
    %v958 = vunpack.c.0.s8 %v957
    %v959 = vperm.slane %v951, %v958
    %v960 = vrot.slane %v827, 4
    %v961 = vsel %vm172, %v960, %v823
    %v962 = vrot.slane %v823, 4
    %v963 = vsel %vm172, %v827, %v962
    %v965 = vunpack.c.l.s4 1983009808
    %v966 = vunpack.c.0.s8 %v965
    %v967 = vperm.slane %v961, %v966
    %v969 = vunpack.c.l.s4 1983009808
    %v970 = vunpack.c.0.s8 %v969
    %v971 = vperm.slane %v963, %v970
    %v972 = vrot.slane %v943, 4
    %v973 = vsel %vm172, %v972, %v931
    %v974 = vrot.slane %v931, 4
    %v975 = vsel %vm172, %v943, %v974
    %v977 = vunpack.c.l.s4 1934713408
    %v978 = vunpack.c.0.s8 %v977
    %v979 = vperm.slane %v973, %v978
    %v981 = vunpack.c.l.s4 1934713408
    %v982 = vunpack.c.0.s8 %v981
    %v983 = vperm.slane %v975, %v982
    %v984 = vrot.slane %v947, 4
    %v985 = vsel %vm172, %v984, %v935
    %v987 = vunpack.c.l.s4 1934713408
    %v988 = vunpack.c.0.s8 %v987
    %v989 = vperm.slane %v985, %v988
    %v990 = vrot.slane %v967, 4
    %v991 = vsel %vm172, %v990, %v955
    %v992 = vrot.slane %v955, 4
    %v993 = vsel %vm172, %v967, %v992
    %v995 = vunpack.c.l.s4 1934713408
    %v996 = vunpack.c.0.s8 %v995
    %v997 = vperm.slane %v991, %v996
    %v999 = vunpack.c.l.s4 1934713408
    %v1000 = vunpack.c.0.s8 %v999
    %v1001 = vperm.slane %v993, %v1000
    %v1002 = vrot.slane %v971, 4
    %v1003 = vsel %vm172, %v1002, %v959
    %v1005 = vunpack.c.l.s4 1934713408
    %v1006 = vunpack.c.0.s8 %v1005
    %v1007 = vperm.slane %v1003, %v1006
    %v1008 = vrot.slane %v997, 4
    %v1009 = vsel %vm172, %v1008, %v979
    %v1010 = vrot.slane %v979, 4
    %v1011 = vsel %vm172, %v997, %v1010
    %v1012 = vrot.slane %v1001, 4
    %v1013 = vsel %vm172, %v1012, %v983
    %v1014 = vrot.slane %v983, 4
    %v1015 = vsel %vm172, %v1001, %v1014
    %v1016 = vrot.slane %v1007, 4
    %v1017 = vsel %vm172, %v1016, %v989
    %v1018 = vrot.slane %v989, 4
    %v1019 = vsel %vm172, %v1007, %v1018
    %1022 = vrot.lane.b32.xlu0 %v134, 120
    %v1023 = vpop.permute.xlu0 %1022
    %1024 = vrot.lane.b32.xlu0 %v137, 120
    %v1025 = vpop.permute.xlu0 %1024
    %1028 = vrot.lane.b32.xlu0 %v134, 112
    %v1029 = vpop.permute.xlu0 %1028
    %1030 = vrot.lane.b32.xlu0 %v137, 112
    %v1031 = vpop.permute.xlu0 %1030
    %1034 = vrot.lane.b32.xlu0 %v134, 104
    %v1035 = vpop.permute.xlu0 %1034
    %1036 = vrot.lane.b32.xlu0 %v137, 104
    %v1037 = vpop.permute.xlu0 %1036
    %1040 = vrot.lane.b32.xlu0 %v134, 96
    %v1041 = vpop.permute.xlu0 %1040
    %1042 = vrot.lane.b32.xlu0 %v137, 96
    %v1043 = vpop.permute.xlu0 %1042
    %1046 = vrot.lane.b32.xlu0 %v134, 88
    %v1047 = vpop.permute.xlu0 %1046
    %1048 = vrot.lane.b32.xlu0 %v137, 88
    %v1049 = vpop.permute.xlu0 %1048
    %v1052 = vrot.slane %v1029, 4
    %v1053 = vsel %vm172, %v1052, %v134
    %v1054 = vrot.slane %v134, 4
    %v1055 = vsel %vm172, %v1029, %v1054
    %v1057 = vunpack.c.l.s4 1983009808
    %v1058 = vunpack.c.0.s8 %v1057
    %v1059 = vperm.slane %v1053, %v1058
    %v1061 = vunpack.c.l.s4 1983009808
    %v1062 = vunpack.c.0.s8 %v1061
    %v1063 = vperm.slane %v1055, %v1062
    %v1064 = vrot.slane %v1035, 4
    %v1065 = vsel %vm172, %v1064, %v1023
    %v1066 = vrot.slane %v1023, 4
    %v1067 = vsel %vm172, %v1035, %v1066
    %v1069 = vunpack.c.l.s4 1983009808
    %v1070 = vunpack.c.0.s8 %v1069
    %v1071 = vperm.slane %v1065, %v1070
    %v1073 = vunpack.c.l.s4 1983009808
    %v1074 = vunpack.c.0.s8 %v1073
    %v1075 = vperm.slane %v1067, %v1074
    %v1076 = vrot.slane %v1041, 4
    %v1077 = vsel %vm172, 0.0, %v1076
    %v1079 = vunpack.c.l.s4 1983009808
    %v1080 = vunpack.c.0.s8 %v1079
    %v1081 = vperm.slane %v1041, %v1080
    %v1083 = vunpack.c.l.s4 1983009808
    %v1084 = vunpack.c.0.s8 %v1083
    %v1085 = vperm.slane %v1077, %v1084
    %v1086 = vrot.slane %v1047, 4
    %v1087 = vsel %vm172, 0.0, %v1086
    %v1089 = vunpack.c.l.s4 1983009808
    %v1090 = vunpack.c.0.s8 %v1089
    %v1091 = vperm.slane %v1047, %v1090
    %v1093 = vunpack.c.l.s4 1983009808
    %v1094 = vunpack.c.0.s8 %v1093
    %v1095 = vperm.slane %v1087, %v1094
    %v1096 = vrot.slane %v1071, 4
    %v1097 = vsel %vm172, %v1096, %v1059
    %v1098 = vrot.slane %v1059, 4
    %v1099 = vsel %vm172, %v1071, %v1098
    %v1101 = vunpack.c.l.s4 1934713408
    %v1102 = vunpack.c.0.s8 %v1101
    %v1103 = vperm.slane %v1097, %v1102
    %v1105 = vunpack.c.l.s4 1934713408
    %v1106 = vunpack.c.0.s8 %v1105
    %v1107 = vperm.slane %v1099, %v1106
    %v1108 = vrot.slane %v1075, 4
    %v1109 = vsel %vm172, %v1108, %v1063
    %v1110 = vrot.slane %v1063, 4
    %v1111 = vsel %vm172, %v1075, %v1110
    %v1113 = vunpack.c.l.s4 1934713408
    %v1114 = vunpack.c.0.s8 %v1113
    %v1115 = vperm.slane %v1109, %v1114
    %v1117 = vunpack.c.l.s4 1934713408
    %v1118 = vunpack.c.0.s8 %v1117
    %v1119 = vperm.slane %v1111, %v1118
    %v1120 = vrot.slane %v1091, 4
    %v1121 = vsel %vm172, %v1120, %v1081
    %v1122 = vrot.slane %v1081, 4
    %v1123 = vsel %vm172, %v1091, %v1122
    %v1125 = vunpack.c.l.s4 1934713408
    %v1126 = vunpack.c.0.s8 %v1125
    %v1127 = vperm.slane %v1121, %v1126
    %v1129 = vunpack.c.l.s4 1934713408
    %v1130 = vunpack.c.0.s8 %v1129
    %v1131 = vperm.slane %v1123, %v1130
    %v1132 = vrot.slane %v1095, 4
    %v1133 = vsel %vm172, %v1132, %v1085
    %v1134 = vrot.slane %v1085, 4
    %v1135 = vsel %vm172, %v1095, %v1134
    %v1137 = vunpack.c.l.s4 1934713408
    %v1138 = vunpack.c.0.s8 %v1137
    %v1139 = vperm.slane %v1133, %v1138
    %v1141 = vunpack.c.l.s4 1934713408
    %v1142 = vunpack.c.0.s8 %v1141
    %v1143 = vperm.slane %v1135, %v1142
    %v1144 = vrot.slane %v1127, 4
    %v1145 = vsel %vm172, %v1144, %v1103
    %v1146 = vrot.slane %v1103, 4
    %v1147 = vsel %vm172, %v1127, %v1146
    %v1148 = vrot.slane %v1131, 4
    %v1149 = vsel %vm172, %v1148, %v1107
    %v1150 = vrot.slane %v1107, 4
    %v1151 = vsel %vm172, %v1131, %v1150
    %v1152 = vrot.slane %v1139, 4
    %v1153 = vsel %vm172, %v1152, %v1115
    %v1154 = vrot.slane %v1115, 4
    %v1155 = vsel %vm172, %v1139, %v1154
    %v1156 = vrot.slane %v1143, 4
    %v1157 = vsel %vm172, %v1156, %v1119
    %v1158 = vrot.slane %v1119, 4
    %v1159 = vsel %vm172, %v1143, %v1158
    %v1160 = vrot.slane %v1031, 4
    %v1161 = vsel %vm172, %v1160, %v137
    %v1162 = vrot.slane %v137, 4
    %v1163 = vsel %vm172, %v1031, %v1162
    %v1165 = vunpack.c.l.s4 1983009808
    %v1166 = vunpack.c.0.s8 %v1165
    %v1167 = vperm.slane %v1161, %v1166
    %v1169 = vunpack.c.l.s4 1983009808
    %v1170 = vunpack.c.0.s8 %v1169
    %v1171 = vperm.slane %v1163, %v1170
    %v1172 = vrot.slane %v1037, 4
    %v1173 = vsel %vm172, %v1172, %v1025
    %v1174 = vrot.slane %v1025, 4
    %v1175 = vsel %vm172, %v1037, %v1174
    %v1177 = vunpack.c.l.s4 1983009808
    %v1178 = vunpack.c.0.s8 %v1177
    %v1179 = vperm.slane %v1173, %v1178
    %v1181 = vunpack.c.l.s4 1983009808
    %v1182 = vunpack.c.0.s8 %v1181
    %v1183 = vperm.slane %v1175, %v1182
    %v1184 = vrot.slane %v1043, 4
    %v1185 = vsel %vm172, 0.0, %v1184
    %v1187 = vunpack.c.l.s4 1983009808
    %v1188 = vunpack.c.0.s8 %v1187
    %v1189 = vperm.slane %v1043, %v1188
    %v1191 = vunpack.c.l.s4 1983009808
    %v1192 = vunpack.c.0.s8 %v1191
    %v1193 = vperm.slane %v1185, %v1192
    %v1194 = vrot.slane %v1049, 4
    %v1195 = vsel %vm172, 0.0, %v1194
    %v1197 = vunpack.c.l.s4 1983009808
    %v1198 = vunpack.c.0.s8 %v1197
    %v1199 = vperm.slane %v1049, %v1198
    %v1201 = vunpack.c.l.s4 1983009808
    %v1202 = vunpack.c.0.s8 %v1201
    %v1203 = vperm.slane %v1195, %v1202
    %v1204 = vrot.slane %v1179, 4
    %v1205 = vsel %vm172, %v1204, %v1167
    %v1206 = vrot.slane %v1167, 4
    %v1207 = vsel %vm172, %v1179, %v1206
    %v1209 = vunpack.c.l.s4 1934713408
    %v1210 = vunpack.c.0.s8 %v1209
    %v1211 = vperm.slane %v1205, %v1210
    %v1213 = vunpack.c.l.s4 1934713408
    %v1214 = vunpack.c.0.s8 %v1213
    %v1215 = vperm.slane %v1207, %v1214
    %v1216 = vrot.slane %v1183, 4
    %v1217 = vsel %vm172, %v1216, %v1171
    %v1218 = vrot.slane %v1171, 4
    %v1219 = vsel %vm172, %v1183, %v1218
    %v1221 = vunpack.c.l.s4 1934713408
    %v1222 = vunpack.c.0.s8 %v1221
    %v1223 = vperm.slane %v1217, %v1222
    %v1225 = vunpack.c.l.s4 1934713408
    %v1226 = vunpack.c.0.s8 %v1225
    %v1227 = vperm.slane %v1219, %v1226
    %v1228 = vrot.slane %v1199, 4
    %v1229 = vsel %vm172, %v1228, %v1189
    %v1230 = vrot.slane %v1189, 4
    %v1231 = vsel %vm172, %v1199, %v1230
    %v1233 = vunpack.c.l.s4 1934713408
    %v1234 = vunpack.c.0.s8 %v1233
    %v1235 = vperm.slane %v1229, %v1234
    %v1237 = vunpack.c.l.s4 1934713408
    %v1238 = vunpack.c.0.s8 %v1237
    %v1239 = vperm.slane %v1231, %v1238
    %v1240 = vrot.slane %v1203, 4
    %v1241 = vsel %vm172, %v1240, %v1193
    %v1242 = vrot.slane %v1193, 4
    %v1243 = vsel %vm172, %v1203, %v1242
    %v1245 = vunpack.c.l.s4 1934713408
    %v1246 = vunpack.c.0.s8 %v1245
    %v1247 = vperm.slane %v1241, %v1246
    %v1249 = vunpack.c.l.s4 1934713408
    %v1250 = vunpack.c.0.s8 %v1249
    %v1251 = vperm.slane %v1243, %v1250
    %v1252 = vrot.slane %v1235, 4
    %v1253 = vsel %vm172, %v1252, %v1211
    %v1254 = vrot.slane %v1211, 4
    %v1255 = vsel %vm172, %v1235, %v1254
    %v1256 = vrot.slane %v1239, 4
    %v1257 = vsel %vm172, %v1256, %v1215
    %v1258 = vrot.slane %v1215, 4
    %v1259 = vsel %vm172, %v1239, %v1258
    %v1260 = vrot.slane %v1247, 4
    %v1261 = vsel %vm172, %v1260, %v1223
    %v1262 = vrot.slane %v1223, 4
    %v1263 = vsel %vm172, %v1247, %v1262
    %v1264 = vrot.slane %v1251, 4
    %v1265 = vsel %vm172, %v1264, %v1227
    %v1266 = vrot.slane %v1227, 4
    %v1267 = vsel %vm172, %v1251, %v1266
    %v1268 = vrot.slane %v1149, 4
    %v1269 = vsel %vm172, %v1268, %v1145
    %v1270 = vrot.slane %v1145, 4
    %v1271 = vsel %vm172, %v1149, %v1270
    %v1273 = vunpack.c.l.s4 1983009808
    %v1274 = vunpack.c.0.s8 %v1273
    %v1275 = vperm.slane %v1269, %v1274
    %v1277 = vunpack.c.l.s4 1983009808
    %v1278 = vunpack.c.0.s8 %v1277
    %v1279 = vperm.slane %v1271, %v1278
    %v1280 = vrot.slane %v1151, 4
    %v1281 = vsel %vm172, %v1280, %v1147
    %v1282 = vrot.slane %v1147, 4
    %v1283 = vsel %vm172, %v1151, %v1282
    %v1285 = vunpack.c.l.s4 1983009808
    %v1286 = vunpack.c.0.s8 %v1285
    %v1287 = vperm.slane %v1281, %v1286
    %v1289 = vunpack.c.l.s4 1983009808
    %v1290 = vunpack.c.0.s8 %v1289
    %v1291 = vperm.slane %v1283, %v1290
    %v1292 = vrot.slane %v1157, 4
    %v1293 = vsel %vm172, %v1292, %v1153
    %v1294 = vrot.slane %v1153, 4
    %v1295 = vsel %vm172, %v1157, %v1294
    %v1297 = vunpack.c.l.s4 1983009808
    %v1298 = vunpack.c.0.s8 %v1297
    %v1299 = vperm.slane %v1293, %v1298
    %v1301 = vunpack.c.l.s4 1983009808
    %v1302 = vunpack.c.0.s8 %v1301
    %v1303 = vperm.slane %v1295, %v1302
    %v1304 = vrot.slane %v1159, 4
    %v1305 = vsel %vm172, %v1304, %v1155
    %v1306 = vrot.slane %v1155, 4
    %v1307 = vsel %vm172, %v1159, %v1306
    %v1309 = vunpack.c.l.s4 1983009808
    %v1310 = vunpack.c.0.s8 %v1309
    %v1311 = vperm.slane %v1305, %v1310
    %v1313 = vunpack.c.l.s4 1983009808
    %v1314 = vunpack.c.0.s8 %v1313
    %v1315 = vperm.slane %v1307, %v1314
    %v1316 = vrot.slane %v1287, 4
    %v1317 = vsel %vm172, %v1316, %v1275
    %v1318 = vrot.slane %v1275, 4
    %v1319 = vsel %vm172, %v1287, %v1318
    %v1321 = vunpack.c.l.s4 1934713408
    %v1322 = vunpack.c.0.s8 %v1321
    %v1323 = vperm.slane %v1317, %v1322
    %v1325 = vunpack.c.l.s4 1934713408
    %v1326 = vunpack.c.0.s8 %v1325
    %v1327 = vperm.slane %v1319, %v1326
    %v1328 = vrot.slane %v1291, 4
    %v1329 = vsel %vm172, %v1328, %v1279
    %v1331 = vunpack.c.l.s4 1934713408
    %v1332 = vunpack.c.0.s8 %v1331
    %v1333 = vperm.slane %v1329, %v1332
    %v1334 = vrot.slane %v1311, 4
    %v1335 = vsel %vm172, %v1334, %v1299
    %v1336 = vrot.slane %v1299, 4
    %v1337 = vsel %vm172, %v1311, %v1336
    %v1339 = vunpack.c.l.s4 1934713408
    %v1340 = vunpack.c.0.s8 %v1339
    %v1341 = vperm.slane %v1335, %v1340
    %v1343 = vunpack.c.l.s4 1934713408
    %v1344 = vunpack.c.0.s8 %v1343
    %v1345 = vperm.slane %v1337, %v1344
    %v1346 = vrot.slane %v1315, 4
    %v1347 = vsel %vm172, %v1346, %v1303
    %v1349 = vunpack.c.l.s4 1934713408
    %v1350 = vunpack.c.0.s8 %v1349
    %v1351 = vperm.slane %v1347, %v1350
    %v1352 = vrot.slane %v1341, 4
    %v1353 = vsel %vm172, %v1352, %v1323
    %v1354 = vrot.slane %v1323, 4
    %v1355 = vsel %vm172, %v1341, %v1354
    %v1356 = vrot.slane %v1345, 4
    %v1357 = vsel %vm172, %v1356, %v1327
    %v1358 = vrot.slane %v1327, 4
    %v1359 = vsel %vm172, %v1345, %v1358
    %v1360 = vrot.slane %v1351, 4
    %v1361 = vsel %vm172, %v1360, %v1333
    %v1362 = vrot.slane %v1333, 4
    %v1363 = vsel %vm172, %v1351, %v1362
    %v1364 = vrot.slane %v1257, 4
    %v1365 = vsel %vm172, %v1364, %v1253
    %v1366 = vrot.slane %v1253, 4
    %v1367 = vsel %vm172, %v1257, %v1366
    %v1369 = vunpack.c.l.s4 1983009808
    %v1370 = vunpack.c.0.s8 %v1369
    %v1371 = vperm.slane %v1365, %v1370
    %v1373 = vunpack.c.l.s4 1983009808
    %v1374 = vunpack.c.0.s8 %v1373
    %v1375 = vperm.slane %v1367, %v1374
    %v1376 = vrot.slane %v1259, 4
    %v1377 = vsel %vm172, %v1376, %v1255
    %v1378 = vrot.slane %v1255, 4
    %v1379 = vsel %vm172, %v1259, %v1378
    %v1381 = vunpack.c.l.s4 1983009808
    %v1382 = vunpack.c.0.s8 %v1381
    %v1383 = vperm.slane %v1377, %v1382
    %v1385 = vunpack.c.l.s4 1983009808
    %v1386 = vunpack.c.0.s8 %v1385
    %v1387 = vperm.slane %v1379, %v1386
    %v1388 = vrot.slane %v1265, 4
    %v1389 = vsel %vm172, %v1388, %v1261
    %v1390 = vrot.slane %v1261, 4
    %v1391 = vsel %vm172, %v1265, %v1390
    %v1393 = vunpack.c.l.s4 1983009808
    %v1394 = vunpack.c.0.s8 %v1393
    %v1395 = vperm.slane %v1389, %v1394
    %v1397 = vunpack.c.l.s4 1983009808
    %v1398 = vunpack.c.0.s8 %v1397
    %v1399 = vperm.slane %v1391, %v1398
    %v1400 = vrot.slane %v1267, 4
    %v1401 = vsel %vm172, %v1400, %v1263
    %v1402 = vrot.slane %v1263, 4
    %v1403 = vsel %vm172, %v1267, %v1402
    %v1405 = vunpack.c.l.s4 1983009808
    %v1406 = vunpack.c.0.s8 %v1405
    %v1407 = vperm.slane %v1401, %v1406
    %v1409 = vunpack.c.l.s4 1983009808
    %v1410 = vunpack.c.0.s8 %v1409
    %v1411 = vperm.slane %v1403, %v1410
    %v1412 = vrot.slane %v1383, 4
    %v1413 = vsel %vm172, %v1412, %v1371
    %v1414 = vrot.slane %v1371, 4
    %v1415 = vsel %vm172, %v1383, %v1414
    %v1417 = vunpack.c.l.s4 1934713408
    %v1418 = vunpack.c.0.s8 %v1417
    %v1419 = vperm.slane %v1413, %v1418
    %v1421 = vunpack.c.l.s4 1934713408
    %v1422 = vunpack.c.0.s8 %v1421
    %v1423 = vperm.slane %v1415, %v1422
    %v1424 = vrot.slane %v1387, 4
    %v1425 = vsel %vm172, %v1424, %v1375
    %v1427 = vunpack.c.l.s4 1934713408
    %v1428 = vunpack.c.0.s8 %v1427
    %v1429 = vperm.slane %v1425, %v1428
    %v1430 = vrot.slane %v1407, 4
    %v1431 = vsel %vm172, %v1430, %v1395
    %v1432 = vrot.slane %v1395, 4
    %v1433 = vsel %vm172, %v1407, %v1432
    %v1435 = vunpack.c.l.s4 1934713408
    %v1436 = vunpack.c.0.s8 %v1435
    %v1437 = vperm.slane %v1431, %v1436
    %v1439 = vunpack.c.l.s4 1934713408
    %v1440 = vunpack.c.0.s8 %v1439
    %v1441 = vperm.slane %v1433, %v1440
    %v1442 = vrot.slane %v1411, 4
    %v1443 = vsel %vm172, %v1442, %v1399
    %v1445 = vunpack.c.l.s4 1934713408
    %v1446 = vunpack.c.0.s8 %v1445
    %v1447 = vperm.slane %v1443, %v1446
    %v1448 = vrot.slane %v1437, 4
    %v1449 = vsel %vm172, %v1448, %v1419
    %v1450 = vrot.slane %v1419, 4
    %v1451 = vsel %vm172, %v1437, %v1450
    %v1452 = vrot.slane %v1441, 4
    %v1453 = vsel %vm172, %v1452, %v1423
    %v1454 = vrot.slane %v1423, 4
    %v1455 = vsel %vm172, %v1441, %v1454
    %v1456 = vrot.slane %v1447, 4
    %v1457 = vsel %vm172, %v1456, %v1429
    %v1458 = vrot.slane %v1429, 4
    %v1459 = vsel %vm172, %v1447, %v1458
    %vm1460 = vcmask 64512
    %v1462 = vsel %vm1460, %v473, 0
    %v1465 = vsel %vm1460, %v913, 0
    %1467 = vmatpush.xpose.msra.mxu0 0.0
    %1468 = vmatpush.xpose.msra.mxu0 0.0
    %1469 = vmatpush.xpose.msra.mxu0 0.0
    %1470 = vmatpush.xpose.msra.mxu0 0.0
    %1471 = vmatpush.xpose.msra.mxu0 0.0
    %1472 = vmatpush.xpose.msra.mxu0 0.0
    %1473 = vmatpush.xpose.msra.mxu0 0.0
    %1474 = vmatpush.xpose.msra.mxu0 0.0
    %1475 = vmatpush.xpose.msra.mxu0 0.0
    %1476 = vmatpush.xpose.msra.mxu0 0.0
    %1477 = vmatpush.xpose.msra.mxu0 0.0
    %1478 = vmatpush.xpose.msra.mxu0 0.0
    %1479 = vmatpush.xpose.msra.mxu0 0.0
    %1480 = vmatpush.xpose.msra.mxu0 0.0
    %1481 = vmatpush.xpose.msra.mxu0 0.0
    %1482 = vmatpush.xpose.msra.mxu0 %v1465
    %1483 = vmatmul.f32.gmra.mxu0 %v1462
    %v1484 = vpop.f32.mrf.mxu0
    %v1485 = vadd.f32 0.0, %v1484
    %1486 = vdwg.mxu0
    %v1488 = vsel %vm1460, %v475, 0
    %v1491 = vsel %vm1460, %v915, 0
    %1493 = vmatpush.xpose.msra.mxu0 0.0
    %1494 = vmatpush.xpose.msra.mxu0 0.0
    %1495 = vmatpush.xpose.msra.mxu0 0.0
    %1496 = vmatpush.xpose.msra.mxu0 0.0
    %1497 = vmatpush.xpose.msra.mxu0 0.0
    %1498 = vmatpush.xpose.msra.mxu0 0.0
    %1499 = vmatpush.xpose.msra.mxu0 0.0
    %1500 = vmatpush.xpose.msra.mxu0 0.0
    %1501 = vmatpush.xpose.msra.mxu0 0.0
    %1502 = vmatpush.xpose.msra.mxu0 0.0
    %1503 = vmatpush.xpose.msra.mxu0 0.0
    %1504 = vmatpush.xpose.msra.mxu0 0.0
    %1505 = vmatpush.xpose.msra.mxu0 0.0
    %1506 = vmatpush.xpose.msra.mxu0 0.0
    %1507 = vmatpush.xpose.msra.mxu0 0.0
    %1508 = vmatpush.xpose.msra.mxu0 %v1491
    %1509 = vmatmul.f32.gmra.mxu0 %v1488
    %v1510 = vpop.f32.mrf.mxu0
    %v1511 = vadd.f32 0.0, %v1510
    %1512 = vdwg.mxu0
    %v1514 = vsel %vm1460, %v477, 0
    %v1517 = vsel %vm1460, %v917, 0
    %1519 = vmatpush.xpose.msra.mxu0 0.0
    %1520 = vmatpush.xpose.msra.mxu0 0.0
    %1521 = vmatpush.xpose.msra.mxu0 0.0
    %1522 = vmatpush.xpose.msra.mxu0 0.0
    %1523 = vmatpush.xpose.msra.mxu0 0.0
    %1524 = vmatpush.xpose.msra.mxu0 0.0
    %1525 = vmatpush.xpose.msra.mxu0 0.0
    %1526 = vmatpush.xpose.msra.mxu0 0.0
    %1527 = vmatpush.xpose.msra.mxu0 0.0
    %1528 = vmatpush.xpose.msra.mxu0 0.0
    %1529 = vmatpush.xpose.msra.mxu0 0.0
    %1530 = vmatpush.xpose.msra.mxu0 0.0
    %1531 = vmatpush.xpose.msra.mxu0 0.0
    %1532 = vmatpush.xpose.msra.mxu0 0.0
    %1533 = vmatpush.xpose.msra.mxu0 0.0
    %1534 = vmatpush.xpose.msra.mxu0 %v1517
    %1535 = vmatmul.f32.gmra.mxu0 %v1514
    %v1536 = vpop.f32.mrf.mxu0
    %v1537 = vadd.f32 0.0, %v1536
    %1538 = vdwg.mxu0
    %v1540 = vsel %vm1460, %v479, 0
    %v1543 = vsel %vm1460, %v919, 0
    %1545 = vmatpush.xpose.msra.mxu0 0.0
    %1546 = vmatpush.xpose.msra.mxu0 0.0
    %1547 = vmatpush.xpose.msra.mxu0 0.0
    %1548 = vmatpush.xpose.msra.mxu0 0.0
    %1549 = vmatpush.xpose.msra.mxu0 0.0
    %1550 = vmatpush.xpose.msra.mxu0 0.0
    %1551 = vmatpush.xpose.msra.mxu0 0.0
    %1552 = vmatpush.xpose.msra.mxu0 0.0
    %1553 = vmatpush.xpose.msra.mxu0 0.0
    %1554 = vmatpush.xpose.msra.mxu0 0.0
    %1555 = vmatpush.xpose.msra.mxu0 0.0
    %1556 = vmatpush.xpose.msra.mxu0 0.0
    %1557 = vmatpush.xpose.msra.mxu0 0.0
    %1558 = vmatpush.xpose.msra.mxu0 0.0
    %1559 = vmatpush.xpose.msra.mxu0 0.0
    %1560 = vmatpush.xpose.msra.mxu0 %v1543
    %1561 = vmatmul.f32.gmra.mxu0 %v1540
    %v1562 = vpop.f32.mrf.mxu0
    %v1563 = vadd.f32 0.0, %v1562
    %1564 = vdwg.mxu0
    %v1566 = vsel %vm1460, %v481, 0
    %v1569 = vsel %vm1460, %v921, 0
    %1571 = vmatpush.xpose.msra.mxu0 0.0
    %1572 = vmatpush.xpose.msra.mxu0 0.0
    %1573 = vmatpush.xpose.msra.mxu0 0.0
    %1574 = vmatpush.xpose.msra.mxu0 0.0
    %1575 = vmatpush.xpose.msra.mxu0 0.0
    %1576 = vmatpush.xpose.msra.mxu0 0.0
    %1577 = vmatpush.xpose.msra.mxu0 0.0
    %1578 = vmatpush.xpose.msra.mxu0 0.0
    %1579 = vmatpush.xpose.msra.mxu0 0.0
    %1580 = vmatpush.xpose.msra.mxu0 0.0
    %1581 = vmatpush.xpose.msra.mxu0 0.0
    %1582 = vmatpush.xpose.msra.mxu0 0.0
    %1583 = vmatpush.xpose.msra.mxu0 0.0
    %1584 = vmatpush.xpose.msra.mxu0 0.0
    %1585 = vmatpush.xpose.msra.mxu0 0.0
    %1586 = vmatpush.xpose.msra.mxu0 %v1569
    %1587 = vmatmul.f32.gmra.mxu0 %v1566
    %v1588 = vpop.f32.mrf.mxu0
    %v1589 = vadd.f32 0.0, %v1588
    %1590 = vdwg.mxu0
    %v1592 = vsel %vm1460, %v483, 0
    %v1595 = vsel %vm1460, %v923, 0
    %1597 = vmatpush.xpose.msra.mxu0 0.0
    %1598 = vmatpush.xpose.msra.mxu0 0.0
    %1599 = vmatpush.xpose.msra.mxu0 0.0
    %1600 = vmatpush.xpose.msra.mxu0 0.0
    %1601 = vmatpush.xpose.msra.mxu0 0.0
    %1602 = vmatpush.xpose.msra.mxu0 0.0
    %1603 = vmatpush.xpose.msra.mxu0 0.0
    %1604 = vmatpush.xpose.msra.mxu0 0.0
    %1605 = vmatpush.xpose.msra.mxu0 0.0
    %1606 = vmatpush.xpose.msra.mxu0 0.0
    %1607 = vmatpush.xpose.msra.mxu0 0.0
    %1608 = vmatpush.xpose.msra.mxu0 0.0
    %1609 = vmatpush.xpose.msra.mxu0 0.0
    %1610 = vmatpush.xpose.msra.mxu0 0.0
    %1611 = vmatpush.xpose.msra.mxu0 0.0
    %1612 = vmatpush.xpose.msra.mxu0 %v1595
    %1613 = vmatmul.f32.gmra.mxu0 %v1592
    %v1614 = vpop.f32.mrf.mxu0
    %v1615 = vadd.f32 0.0, %v1614
    %1616 = vdwg.mxu0
    %v1618 = vsel %vm1460, %v569, 0
    %v1621 = vsel %vm1460, %v1009, 0
    %1623 = vmatpush.xpose.msra.mxu0 0.0
    %1624 = vmatpush.xpose.msra.mxu0 0.0
    %1625 = vmatpush.xpose.msra.mxu0 0.0
    %1626 = vmatpush.xpose.msra.mxu0 0.0
    %1627 = vmatpush.xpose.msra.mxu0 0.0
    %1628 = vmatpush.xpose.msra.mxu0 0.0
    %1629 = vmatpush.xpose.msra.mxu0 0.0
    %1630 = vmatpush.xpose.msra.mxu0 0.0
    %1631 = vmatpush.xpose.msra.mxu0 0.0
    %1632 = vmatpush.xpose.msra.mxu0 0.0
    %1633 = vmatpush.xpose.msra.mxu0 0.0
    %1634 = vmatpush.xpose.msra.mxu0 0.0
    %1635 = vmatpush.xpose.msra.mxu0 0.0
    %1636 = vmatpush.xpose.msra.mxu0 0.0
    %1637 = vmatpush.xpose.msra.mxu0 0.0
    %1638 = vmatpush.xpose.msra.mxu0 %v1621
    %1639 = vmatmul.f32.gmra.mxu0 %v1618
    %v1640 = vpop.f32.mrf.mxu0
    %v1641 = vadd.f32 0.0, %v1640
    %1642 = vdwg.mxu0
    %v1644 = vsel %vm1460, %v571, 0
    %v1647 = vsel %vm1460, %v1011, 0
    %1649 = vmatpush.xpose.msra.mxu0 0.0
    %1650 = vmatpush.xpose.msra.mxu0 0.0
    %1651 = vmatpush.xpose.msra.mxu0 0.0
    %1652 = vmatpush.xpose.msra.mxu0 0.0
    %1653 = vmatpush.xpose.msra.mxu0 0.0
    %1654 = vmatpush.xpose.msra.mxu0 0.0
    %1655 = vmatpush.xpose.msra.mxu0 0.0
    %1656 = vmatpush.xpose.msra.mxu0 0.0
    %1657 = vmatpush.xpose.msra.mxu0 0.0
    %1658 = vmatpush.xpose.msra.mxu0 0.0
    %1659 = vmatpush.xpose.msra.mxu0 0.0
    %1660 = vmatpush.xpose.msra.mxu0 0.0
    %1661 = vmatpush.xpose.msra.mxu0 0.0
    %1662 = vmatpush.xpose.msra.mxu0 0.0
    %1663 = vmatpush.xpose.msra.mxu0 0.0
    %1664 = vmatpush.xpose.msra.mxu0 %v1647
    %1665 = vmatmul.f32.gmra.mxu0 %v1644
    %v1666 = vpop.f32.mrf.mxu0
    %v1667 = vadd.f32 0.0, %v1666
    %1668 = vdwg.mxu0
    %v1670 = vsel %vm1460, %v573, 0
    %v1673 = vsel %vm1460, %v1013, 0
    %1675 = vmatpush.xpose.msra.mxu0 0.0
    %1676 = vmatpush.xpose.msra.mxu0 0.0
    %1677 = vmatpush.xpose.msra.mxu0 0.0
    %1678 = vmatpush.xpose.msra.mxu0 0.0
    %1679 = vmatpush.xpose.msra.mxu0 0.0
    %1680 = vmatpush.xpose.msra.mxu0 0.0
    %1681 = vmatpush.xpose.msra.mxu0 0.0
    %1682 = vmatpush.xpose.msra.mxu0 0.0
    %1683 = vmatpush.xpose.msra.mxu0 0.0
    %1684 = vmatpush.xpose.msra.mxu0 0.0
    %1685 = vmatpush.xpose.msra.mxu0 0.0
    %1686 = vmatpush.xpose.msra.mxu0 0.0
    %1687 = vmatpush.xpose.msra.mxu0 0.0
    %1688 = vmatpush.xpose.msra.mxu0 0.0
    %1689 = vmatpush.xpose.msra.mxu0 0.0
    %1690 = vmatpush.xpose.msra.mxu0 %v1673
    %1691 = vmatmul.f32.gmra.mxu0 %v1670
    %v1692 = vpop.f32.mrf.mxu0
    %v1693 = vadd.f32 0.0, %v1692
    %1694 = vdwg.mxu0
    %v1696 = vsel %vm1460, %v575, 0
    %v1699 = vsel %vm1460, %v1015, 0
    %1701 = vmatpush.xpose.msra.mxu0 0.0
    %1702 = vmatpush.xpose.msra.mxu0 0.0
    %1703 = vmatpush.xpose.msra.mxu0 0.0
    %1704 = vmatpush.xpose.msra.mxu0 0.0
    %1705 = vmatpush.xpose.msra.mxu0 0.0
    %1706 = vmatpush.xpose.msra.mxu0 0.0
    %1707 = vmatpush.xpose.msra.mxu0 0.0
    %1708 = vmatpush.xpose.msra.mxu0 0.0
    %1709 = vmatpush.xpose.msra.mxu0 0.0
    %1710 = vmatpush.xpose.msra.mxu0 0.0
    %1711 = vmatpush.xpose.msra.mxu0 0.0
    %1712 = vmatpush.xpose.msra.mxu0 0.0
    %1713 = vmatpush.xpose.msra.mxu0 0.0
    %1714 = vmatpush.xpose.msra.mxu0 0.0
    %1715 = vmatpush.xpose.msra.mxu0 0.0
    %1716 = vmatpush.xpose.msra.mxu0 %v1699
    %1717 = vmatmul.f32.gmra.mxu0 %v1696
    %v1718 = vpop.f32.mrf.mxu0
    %v1719 = vadd.f32 0.0, %v1718
    %1720 = vdwg.mxu0
    %v1722 = vsel %vm1460, %v577, 0
    %v1725 = vsel %vm1460, %v1017, 0
    %1727 = vmatpush.xpose.msra.mxu0 0.0
    %1728 = vmatpush.xpose.msra.mxu0 0.0
    %1729 = vmatpush.xpose.msra.mxu0 0.0
    %1730 = vmatpush.xpose.msra.mxu0 0.0
    %1731 = vmatpush.xpose.msra.mxu0 0.0
    %1732 = vmatpush.xpose.msra.mxu0 0.0
    %1733 = vmatpush.xpose.msra.mxu0 0.0
    %1734 = vmatpush.xpose.msra.mxu0 0.0
    %1735 = vmatpush.xpose.msra.mxu0 0.0
    %1736 = vmatpush.xpose.msra.mxu0 0.0
    %1737 = vmatpush.xpose.msra.mxu0 0.0
    %1738 = vmatpush.xpose.msra.mxu0 0.0
    %1739 = vmatpush.xpose.msra.mxu0 0.0
    %1740 = vmatpush.xpose.msra.mxu0 0.0
    %1741 = vmatpush.xpose.msra.mxu0 0.0
    %1742 = vmatpush.xpose.msra.mxu0 %v1725
    %1743 = vmatmul.f32.gmra.mxu0 %v1722
    %v1744 = vpop.f32.mrf.mxu0
    %v1745 = vadd.f32 0.0, %v1744
    %1746 = vdwg.mxu0
    %v1748 = vsel %vm1460, %v579, 0
    %v1751 = vsel %vm1460, %v1019, 0
    %1753 = vmatpush.xpose.msra.mxu0 0.0
    %1754 = vmatpush.xpose.msra.mxu0 0.0
    %1755 = vmatpush.xpose.msra.mxu0 0.0
    %1756 = vmatpush.xpose.msra.mxu0 0.0
    %1757 = vmatpush.xpose.msra.mxu0 0.0
    %1758 = vmatpush.xpose.msra.mxu0 0.0
    %1759 = vmatpush.xpose.msra.mxu0 0.0
    %1760 = vmatpush.xpose.msra.mxu0 0.0
    %1761 = vmatpush.xpose.msra.mxu0 0.0
    %1762 = vmatpush.xpose.msra.mxu0 0.0
    %1763 = vmatpush.xpose.msra.mxu0 0.0
    %1764 = vmatpush.xpose.msra.mxu0 0.0
    %1765 = vmatpush.xpose.msra.mxu0 0.0
    %1766 = vmatpush.xpose.msra.mxu0 0.0
    %1767 = vmatpush.xpose.msra.mxu0 0.0
    %1768 = vmatpush.xpose.msra.mxu0 %v1751
    %1769 = vmatmul.f32.gmra.mxu0 %v1748
    %v1770 = vpop.f32.mrf.mxu0
    %v1771 = vadd.f32 0.0, %v1770
    %1772 = vdwg.mxu0
    %v1773 = vsel %vm1460, %v1485, -inf
    %1774 = vmax.xlane.f32.xlu0 %v1773
    %v1775 = vpop.xlane.xlu0 %1774
    %v1776 = vsel %vm1460, %v1511, -inf
    %1777 = vmax.xlane.f32.xlu0 %v1776
    %v1778 = vpop.xlane.xlu0 %1777
    %v1779 = vsel %vm1460, %v1537, -inf
    %1780 = vmax.xlane.f32.xlu0 %v1779
    %v1781 = vpop.xlane.xlu0 %1780
    %v1782 = vsel %vm1460, %v1563, -inf
    %1783 = vmax.xlane.f32.xlu0 %v1782
    %v1784 = vpop.xlane.xlu0 %1783
    %v1785 = vsel %vm1460, %v1589, -inf
    %1786 = vmax.xlane.f32.xlu0 %v1785
    %v1787 = vpop.xlane.xlu0 %1786
    %v1788 = vsel %vm1460, %v1615, -inf
    %1789 = vmax.xlane.f32.xlu0 %v1788
    %v1790 = vpop.xlane.xlu0 %1789
    %v1791 = vsel %vm1460, %v1641, -inf
    %1792 = vmax.xlane.f32.xlu0 %v1791
    %v1793 = vpop.xlane.xlu0 %1792
    %v1794 = vsel %vm1460, %v1667, -inf
    %1795 = vmax.xlane.f32.xlu0 %v1794
    %v1796 = vpop.xlane.xlu0 %1795
    %v1797 = vsel %vm1460, %v1693, -inf
    %1798 = vmax.xlane.f32.xlu0 %v1797
    %v1799 = vpop.xlane.xlu0 %1798
    %v1800 = vsel %vm1460, %v1719, -inf
    %1801 = vmax.xlane.f32.xlu0 %v1800
    %v1802 = vpop.xlane.xlu0 %1801
    %v1803 = vsel %vm1460, %v1745, -inf
    %1804 = vmax.xlane.f32.xlu0 %v1803
    %v1805 = vpop.xlane.xlu0 %1804
    %v1806 = vsel %vm1460, %v1771, -inf
    %1807 = vmax.xlane.f32.xlu0 %v1806
    %v1808 = vpop.xlane.xlu0 %1807
    %v1809 = vsub.f32 %v1485, %v1775
    %v1810 = vsub.f32 %v1511, %v1778
    %v1811 = vsub.f32 %v1537, %v1781
    %v1812 = vsub.f32 %v1563, %v1784
    %v1813 = vsub.f32 %v1589, %v1787
    %v1814 = vsub.f32 %v1615, %v1790
    %v1815 = vsub.f32 %v1641, %v1793
    %v1816 = vsub.f32 %v1667, %v1796
    %v1817 = vsub.f32 %v1693, %v1799
    %v1818 = vsub.f32 %v1719, %v1802
    %v1819 = vsub.f32 %v1745, %v1805
    %v1820 = vsub.f32 %v1771, %v1808
    %v1821 = vmul.f32 %v1809, 1.442695
    %v1822 = vpow.pop %v1821
    %v1823 = vmul.f32 %v1810, 1.442695
    %v1824 = vpow.pop %v1823
    %v1825 = vmul.f32 %v1811, 1.442695
    %v1826 = vpow.pop %v1825
    %v1827 = vmul.f32 %v1812, 1.442695
    %v1828 = vpow.pop %v1827
    %v1829 = vmul.f32 %v1813, 1.442695
    %v1830 = vpow.pop %v1829
    %v1831 = vmul.f32 %v1814, 1.442695
    %v1832 = vpow.pop %v1831
    %v1833 = vmul.f32 %v1815, 1.442695
    %v1834 = vpow.pop %v1833
    %v1835 = vmul.f32 %v1816, 1.442695
    %v1836 = vpow.pop %v1835
    %v1837 = vmul.f32 %v1817, 1.442695
    %v1838 = vpow.pop %v1837
    %v1839 = vmul.f32 %v1818, 1.442695
    %v1840 = vpow.pop %v1839
    %v1841 = vmul.f32 %v1819, 1.442695
    %v1842 = vpow.pop %v1841
    %v1843 = vmul.f32 %v1820, 1.442695
    %v1844 = vpow.pop %v1843
    %v1845 = vsel %vm1460, %v1822, 0.0
    %1846 = vadd.xlane.f32.xlu0 %v1845
    %v1847 = vpop.xlane.xlu0 %1846
    %v1848 = vsel %vm1460, %v1824, 0.0
    %1849 = vadd.xlane.f32.xlu0 %v1848
    %v1850 = vpop.xlane.xlu0 %1849
    %v1851 = vsel %vm1460, %v1826, 0.0
    %1852 = vadd.xlane.f32.xlu0 %v1851
    %v1853 = vpop.xlane.xlu0 %1852
    %v1854 = vsel %vm1460, %v1828, 0.0
    %1855 = vadd.xlane.f32.xlu0 %v1854
    %v1856 = vpop.xlane.xlu0 %1855
    %v1857 = vsel %vm1460, %v1830, 0.0
    %1858 = vadd.xlane.f32.xlu0 %v1857
    %v1859 = vpop.xlane.xlu0 %1858
    %v1860 = vsel %vm1460, %v1832, 0.0
    %1861 = vadd.xlane.f32.xlu0 %v1860
    %v1862 = vpop.xlane.xlu0 %1861
    %v1863 = vsel %vm1460, %v1834, 0.0
    %1864 = vadd.xlane.f32.xlu0 %v1863
    %v1865 = vpop.xlane.xlu0 %1864
    %v1866 = vsel %vm1460, %v1836, 0.0
    %1867 = vadd.xlane.f32.xlu0 %v1866
    %v1868 = vpop.xlane.xlu0 %1867
    %v1869 = vsel %vm1460, %v1838, 0.0
    %1870 = vadd.xlane.f32.xlu0 %v1869
    %v1871 = vpop.xlane.xlu0 %1870
    %v1872 = vsel %vm1460, %v1840, 0.0
    %1873 = vadd.xlane.f32.xlu0 %v1872
    %v1874 = vpop.xlane.xlu0 %1873
    %v1875 = vsel %vm1460, %v1842, 0.0
    %1876 = vadd.xlane.f32.xlu0 %v1875
    %v1877 = vpop.xlane.xlu0 %1876
    %v1878 = vsel %vm1460, %v1844, 0.0
    %1879 = vadd.xlane.f32.xlu0 %v1878
    %v1880 = vpop.xlane.xlu0 %1879
    %v1881 = vrcp.pop %v1847
    %v1882 = vmul.f32 %v1847, %v1881
    %v1883 = vsub.f32 1.0, %v1882
    %v1884 = vmul.f32 %v1881, %v1883
    %v1885 = vadd.f32 %v1881, %v1884
    %vm1886 = vweird.f32 %v1847
    %vm1887 = vweird.f32 %v1881
    %vm1888 = vmor %vm1886, %vm1887
    %v1889 = vsel %vm1888, %v1881, %v1885
    %v1890 = vand.u32 2147483647, %v1847
    %vm1891 = vcmp.eq.f32.partialorder %v1890, 8.507059e+37
    %v1892 = vand.u32 %v1847, 2147483648
    %v1893 = vor.u32 1.1754944e-38, %v1892
    %v1894 = vsel %vm1891, %v1893, %v1889
    %v1895 = vmul.f32 %v1822, %v1894
    %v1896 = vrcp.pop %v1850
    %v1897 = vmul.f32 %v1850, %v1896
    %v1898 = vsub.f32 1.0, %v1897
    %v1899 = vmul.f32 %v1896, %v1898
    %v1900 = vadd.f32 %v1896, %v1899
    %vm1901 = vweird.f32 %v1850
    %vm1902 = vweird.f32 %v1896
    %vm1903 = vmor %vm1901, %vm1902
    %v1904 = vsel %vm1903, %v1896, %v1900
    %v1905 = vand.u32 2147483647, %v1850
    %vm1906 = vcmp.eq.f32.partialorder %v1905, 8.507059e+37
    %v1907 = vand.u32 %v1850, 2147483648
    %v1908 = vor.u32 1.1754944e-38, %v1907
    %v1909 = vsel %vm1906, %v1908, %v1904
    %v1910 = vmul.f32 %v1824, %v1909
    %v1911 = vrcp.pop %v1853
    %v1912 = vmul.f32 %v1853, %v1911
    %v1913 = vsub.f32 1.0, %v1912
    %v1914 = vmul.f32 %v1911, %v1913
    %v1915 = vadd.f32 %v1911, %v1914
    %vm1916 = vweird.f32 %v1853
    %vm1917 = vweird.f32 %v1911
    %vm1918 = vmor %vm1916, %vm1917
    %v1919 = vsel %vm1918, %v1911, %v1915
    %v1920 = vand.u32 2147483647, %v1853
    %vm1921 = vcmp.eq.f32.partialorder %v1920, 8.507059e+37
    %v1922 = vand.u32 %v1853, 2147483648
    %v1923 = vor.u32 1.1754944e-38, %v1922
    %v1924 = vsel %vm1921, %v1923, %v1919
    %v1925 = vmul.f32 %v1826, %v1924
    %v1926 = vrcp.pop %v1856
    %v1927 = vmul.f32 %v1856, %v1926
    %v1928 = vsub.f32 1.0, %v1927
    %v1929 = vmul.f32 %v1926, %v1928
    %v1930 = vadd.f32 %v1926, %v1929
    %vm1931 = vweird.f32 %v1856
    %vm1932 = vweird.f32 %v1926
    %vm1933 = vmor %vm1931, %vm1932
    %v1934 = vsel %vm1933, %v1926, %v1930
    %v1935 = vand.u32 2147483647, %v1856
    %vm1936 = vcmp.eq.f32.partialorder %v1935, 8.507059e+37
    %v1937 = vand.u32 %v1856, 2147483648
    %v1938 = vor.u32 1.1754944e-38, %v1937
    %v1939 = vsel %vm1936, %v1938, %v1934
    %v1940 = vmul.f32 %v1828, %v1939
    %v1941 = vrcp.pop %v1859
    %v1942 = vmul.f32 %v1859, %v1941
    %v1943 = vsub.f32 1.0, %v1942
    %v1944 = vmul.f32 %v1941, %v1943
    %v1945 = vadd.f32 %v1941, %v1944
    %vm1946 = vweird.f32 %v1859
    %vm1947 = vweird.f32 %v1941
    %vm1948 = vmor %vm1946, %vm1947
    %v1949 = vsel %vm1948, %v1941, %v1945
    %v1950 = vand.u32 2147483647, %v1859
    %vm1951 = vcmp.eq.f32.partialorder %v1950, 8.507059e+37
    %v1952 = vand.u32 %v1859, 2147483648
    %v1953 = vor.u32 1.1754944e-38, %v1952
    %v1954 = vsel %vm1951, %v1953, %v1949
    %v1955 = vmul.f32 %v1830, %v1954
    %v1956 = vrcp.pop %v1862
    %v1957 = vmul.f32 %v1862, %v1956
    %v1958 = vsub.f32 1.0, %v1957
    %v1959 = vmul.f32 %v1956, %v1958
    %v1960 = vadd.f32 %v1956, %v1959
    %vm1961 = vweird.f32 %v1862
    %vm1962 = vweird.f32 %v1956
    %vm1963 = vmor %vm1961, %vm1962
    %v1964 = vsel %vm1963, %v1956, %v1960
    %v1965 = vand.u32 2147483647, %v1862
    %vm1966 = vcmp.eq.f32.partialorder %v1965, 8.507059e+37
    %v1967 = vand.u32 %v1862, 2147483648
    %v1968 = vor.u32 1.1754944e-38, %v1967
    %v1969 = vsel %vm1966, %v1968, %v1964
    %v1970 = vmul.f32 %v1832, %v1969
    %v1971 = vrcp.pop %v1865
    %v1972 = vmul.f32 %v1865, %v1971
    %v1973 = vsub.f32 1.0, %v1972
    %v1974 = vmul.f32 %v1971, %v1973
    %v1975 = vadd.f32 %v1971, %v1974
    %vm1976 = vweird.f32 %v1865
    %vm1977 = vweird.f32 %v1971
    %vm1978 = vmor %vm1976, %vm1977
    %v1979 = vsel %vm1978, %v1971, %v1975
    %v1980 = vand.u32 2147483647, %v1865
    %vm1981 = vcmp.eq.f32.partialorder %v1980, 8.507059e+37
    %v1982 = vand.u32 %v1865, 2147483648
    %v1983 = vor.u32 1.1754944e-38, %v1982
    %v1984 = vsel %vm1981, %v1983, %v1979
    %v1985 = vmul.f32 %v1834, %v1984
    %v1986 = vrcp.pop %v1868
    %v1987 = vmul.f32 %v1868, %v1986
    %v1988 = vsub.f32 1.0, %v1987
    %v1989 = vmul.f32 %v1986, %v1988
    %v1990 = vadd.f32 %v1986, %v1989
    %vm1991 = vweird.f32 %v1868
    %vm1992 = vweird.f32 %v1986
    %vm1993 = vmor %vm1991, %vm1992
    %v1994 = vsel %vm1993, %v1986, %v1990
    %v1995 = vand.u32 2147483647, %v1868
    %vm1996 = vcmp.eq.f32.partialorder %v1995, 8.507059e+37
    %v1997 = vand.u32 %v1868, 2147483648
    %v1998 = vor.u32 1.1754944e-38, %v1997
    %v1999 = vsel %vm1996, %v1998, %v1994
    %v2000 = vmul.f32 %v1836, %v1999
    %v2001 = vrcp.pop %v1871
    %v2002 = vmul.f32 %v1871, %v2001
    %v2003 = vsub.f32 1.0, %v2002
    %v2004 = vmul.f32 %v2001, %v2003
    %v2005 = vadd.f32 %v2001, %v2004
    %vm2006 = vweird.f32 %v1871
    %vm2007 = vweird.f32 %v2001
    %vm2008 = vmor %vm2006, %vm2007
    %v2009 = vsel %vm2008, %v2001, %v2005
    %v2010 = vand.u32 2147483647, %v1871
    %vm2011 = vcmp.eq.f32.partialorder %v2010, 8.507059e+37
    %v2012 = vand.u32 %v1871, 2147483648
    %v2013 = vor.u32 1.1754944e-38, %v2012
    %v2014 = vsel %vm2011, %v2013, %v2009
    %v2015 = vmul.f32 %v1838, %v2014
    %v2016 = vrcp.pop %v1874
    %v2017 = vmul.f32 %v1874, %v2016
    %v2018 = vsub.f32 1.0, %v2017
    %v2019 = vmul.f32 %v2016, %v2018
    %v2020 = vadd.f32 %v2016, %v2019
    %vm2021 = vweird.f32 %v1874
    %vm2022 = vweird.f32 %v2016
    %vm2023 = vmor %vm2021, %vm2022
    %v2024 = vsel %vm2023, %v2016, %v2020
    %v2025 = vand.u32 2147483647, %v1874
    %vm2026 = vcmp.eq.f32.partialorder %v2025, 8.507059e+37
    %v2027 = vand.u32 %v1874, 2147483648
    %v2028 = vor.u32 1.1754944e-38, %v2027
    %v2029 = vsel %vm2026, %v2028, %v2024
    %v2030 = vmul.f32 %v1840, %v2029
    %v2031 = vrcp.pop %v1877
    %v2032 = vmul.f32 %v1877, %v2031
    %v2033 = vsub.f32 1.0, %v2032
    %v2034 = vmul.f32 %v2031, %v2033
    %v2035 = vadd.f32 %v2031, %v2034
    %vm2036 = vweird.f32 %v1877
    %vm2037 = vweird.f32 %v2031
    %vm2038 = vmor %vm2036, %vm2037
    %v2039 = vsel %vm2038, %v2031, %v2035
    %v2040 = vand.u32 2147483647, %v1877
    %vm2041 = vcmp.eq.f32.partialorder %v2040, 8.507059e+37
    %v2042 = vand.u32 %v1877, 2147483648
    %v2043 = vor.u32 1.1754944e-38, %v2042
    %v2044 = vsel %vm2041, %v2043, %v2039
    %v2045 = vmul.f32 %v1842, %v2044
    %v2046 = vrcp.pop %v1880
    %v2047 = vmul.f32 %v1880, %v2046
    %v2048 = vsub.f32 1.0, %v2047
    %v2049 = vmul.f32 %v2046, %v2048
    %v2050 = vadd.f32 %v2046, %v2049
    %vm2051 = vweird.f32 %v1880
    %vm2052 = vweird.f32 %v2046
    %vm2053 = vmor %vm2051, %vm2052
    %v2054 = vsel %vm2053, %v2046, %v2050
    %v2055 = vand.u32 2147483647, %v1880
    %vm2056 = vcmp.eq.f32.partialorder %v2055, 8.507059e+37
    %v2057 = vand.u32 %v1880, 2147483648
    %v2058 = vor.u32 1.1754944e-38, %v2057
    %v2059 = vsel %vm2056, %v2058, %v2054
    %v2060 = vmul.f32 %v1844, %v2059
    %2061 = vst.msk [vmem:[#allocation4] sm:$0xff] %vm1460, %v1895
    %2062 = vst.msk [vmem:[#allocation4 + $0x8] sm:$0xff] %vm1460, %v1910
    %2063 = vst.msk [vmem:[#allocation4 + $0x10] sm:$0xff] %vm1460, %v1925
    %2064 = vst.msk [vmem:[#allocation4 + $0x18] sm:$0xff] %vm1460, %v1940
    %2065 = vst.msk [vmem:[#allocation4 + $0x20] sm:$0xff] %vm1460, %v1955
    %2066 = vst.msk [vmem:[#allocation4 + $0x28] sm:$0xff] %vm1460, %v1970
    %2067 = vst.msk [vmem:[#allocation4 + $0x30] sm:$0xff] %vm1460, %v1985
    %2068 = vst.msk [vmem:[#allocation4 + $0x38] sm:$0xff] %vm1460, %v2000
    %2069 = vst.msk [vmem:[#allocation4 + $0x40] sm:$0xff] %vm1460, %v2015
    %2070 = vst.msk [vmem:[#allocation4 + $0x48] sm:$0xff] %vm1460, %v2030
    %2071 = vst.msk [vmem:[#allocation4 + $0x50] sm:$0xff] %vm1460, %v2045
    %2072 = vst.msk [vmem:[#allocation4 + $0x58] sm:$0xff] %vm1460, %v2060
    %v2074 = vsel %vm1460, %v1895, 0
    %2076 = vmatpush.msra.mxu0 0.0
    %2077 = vmatpush.msra.mxu0 0.0
    %2078 = vmatpush.msra.mxu0 0.0
    %2079 = vmatpush.msra.mxu0 0.0
    %2080 = vmatpush.msra.mxu0 0.0
    %2081 = vmatpush.msra.mxu0 0.0
    %2082 = vmatpush.msra.mxu0 0.0
    %2083 = vmatpush.msra.mxu0 0.0
    %2084 = vmatpush.msra.mxu0 0.0
    %2085 = vmatpush.msra.mxu0 0.0
    %2086 = vmatpush.msra.mxu0 0.0
    %2087 = vmatpush.msra.mxu0 0.0
    %2088 = vmatpush.msra.mxu0 0.0
    %2089 = vmatpush.msra.mxu0 0.0
    %2090 = vmatpush.msra.mxu0 0.0
    %2091 = vmatpush.msra.mxu0 %v1353
    %2092 = vmatmul.f32.gmra.mxu0 %v2074
    %v2093 = vpop.f32.mrf.mxu0
    %v2094 = vadd.f32 0.0, %v2093
    %2095 = vdwg.mxu0
    %v2097 = vsel %vm1460, %v1910, 0
    %2099 = vmatpush.msra.mxu0 0.0
    %2100 = vmatpush.msra.mxu0 0.0
    %2101 = vmatpush.msra.mxu0 0.0
    %2102 = vmatpush.msra.mxu0 0.0
    %2103 = vmatpush.msra.mxu0 0.0
    %2104 = vmatpush.msra.mxu0 0.0
    %2105 = vmatpush.msra.mxu0 0.0
    %2106 = vmatpush.msra.mxu0 0.0
    %2107 = vmatpush.msra.mxu0 0.0
    %2108 = vmatpush.msra.mxu0 0.0
    %2109 = vmatpush.msra.mxu0 0.0
    %2110 = vmatpush.msra.mxu0 0.0
    %2111 = vmatpush.msra.mxu0 0.0
    %2112 = vmatpush.msra.mxu0 0.0
    %2113 = vmatpush.msra.mxu0 0.0
    %2114 = vmatpush.msra.mxu0 %v1355
    %2115 = vmatmul.f32.gmra.mxu0 %v2097
    %v2116 = vpop.f32.mrf.mxu0
    %v2117 = vadd.f32 0.0, %v2116
    %2118 = vdwg.mxu0
    %v2120 = vsel %vm1460, %v1925, 0
    %2122 = vmatpush.msra.mxu0 0.0
    %2123 = vmatpush.msra.mxu0 0.0
    %2124 = vmatpush.msra.mxu0 0.0
    %2125 = vmatpush.msra.mxu0 0.0
    %2126 = vmatpush.msra.mxu0 0.0
    %2127 = vmatpush.msra.mxu0 0.0
    %2128 = vmatpush.msra.mxu0 0.0
    %2129 = vmatpush.msra.mxu0 0.0
    %2130 = vmatpush.msra.mxu0 0.0
    %2131 = vmatpush.msra.mxu0 0.0
    %2132 = vmatpush.msra.mxu0 0.0
    %2133 = vmatpush.msra.mxu0 0.0
    %2134 = vmatpush.msra.mxu0 0.0
    %2135 = vmatpush.msra.mxu0 0.0
    %2136 = vmatpush.msra.mxu0 0.0
    %2137 = vmatpush.msra.mxu0 %v1357
    %2138 = vmatmul.f32.gmra.mxu0 %v2120
    %v2139 = vpop.f32.mrf.mxu0
    %v2140 = vadd.f32 0.0, %v2139
    %2141 = vdwg.mxu0
    %v2143 = vsel %vm1460, %v1940, 0
    %2145 = vmatpush.msra.mxu0 0.0
    %2146 = vmatpush.msra.mxu0 0.0
    %2147 = vmatpush.msra.mxu0 0.0
    %2148 = vmatpush.msra.mxu0 0.0
    %2149 = vmatpush.msra.mxu0 0.0
    %2150 = vmatpush.msra.mxu0 0.0
    %2151 = vmatpush.msra.mxu0 0.0
    %2152 = vmatpush.msra.mxu0 0.0
    %2153 = vmatpush.msra.mxu0 0.0
    %2154 = vmatpush.msra.mxu0 0.0
    %2155 = vmatpush.msra.mxu0 0.0
    %2156 = vmatpush.msra.mxu0 0.0
    %2157 = vmatpush.msra.mxu0 0.0
    %2158 = vmatpush.msra.mxu0 0.0
    %2159 = vmatpush.msra.mxu0 0.0
    %2160 = vmatpush.msra.mxu0 %v1359
    %2161 = vmatmul.f32.gmra.mxu0 %v2143
    %v2162 = vpop.f32.mrf.mxu0
    %v2163 = vadd.f32 0.0, %v2162
    %2164 = vdwg.mxu0
    %v2166 = vsel %vm1460, %v1955, 0
    %2168 = vmatpush.msra.mxu0 0.0
    %2169 = vmatpush.msra.mxu0 0.0
    %2170 = vmatpush.msra.mxu0 0.0
    %2171 = vmatpush.msra.mxu0 0.0
    %2172 = vmatpush.msra.mxu0 0.0
    %2173 = vmatpush.msra.mxu0 0.0
    %2174 = vmatpush.msra.mxu0 0.0
    %2175 = vmatpush.msra.mxu0 0.0
    %2176 = vmatpush.msra.mxu0 0.0
    %2177 = vmatpush.msra.mxu0 0.0
    %2178 = vmatpush.msra.mxu0 0.0
    %2179 = vmatpush.msra.mxu0 0.0
    %2180 = vmatpush.msra.mxu0 0.0
    %2181 = vmatpush.msra.mxu0 0.0
    %2182 = vmatpush.msra.mxu0 0.0
    %2183 = vmatpush.msra.mxu0 %v1361
    %2184 = vmatmul.f32.gmra.mxu0 %v2166
    %v2185 = vpop.f32.mrf.mxu0
    %v2186 = vadd.f32 0.0, %v2185
    %2187 = vdwg.mxu0
    %v2189 = vsel %vm1460, %v1970, 0
    %2191 = vmatpush.msra.mxu0 0.0
    %2192 = vmatpush.msra.mxu0 0.0
    %2193 = vmatpush.msra.mxu0 0.0
    %2194 = vmatpush.msra.mxu0 0.0
    %2195 = vmatpush.msra.mxu0 0.0
    %2196 = vmatpush.msra.mxu0 0.0
    %2197 = vmatpush.msra.mxu0 0.0
    %2198 = vmatpush.msra.mxu0 0.0
    %2199 = vmatpush.msra.mxu0 0.0
    %2200 = vmatpush.msra.mxu0 0.0
    %2201 = vmatpush.msra.mxu0 0.0
    %2202 = vmatpush.msra.mxu0 0.0
    %2203 = vmatpush.msra.mxu0 0.0
    %2204 = vmatpush.msra.mxu0 0.0
    %2205 = vmatpush.msra.mxu0 0.0
    %2206 = vmatpush.msra.mxu0 %v1363
    %2207 = vmatmul.f32.gmra.mxu0 %v2189
    %v2208 = vpop.f32.mrf.mxu0
    %v2209 = vadd.f32 0.0, %v2208
    %2210 = vdwg.mxu0
    %v2212 = vsel %vm1460, %v1985, 0
    %2214 = vmatpush.msra.mxu0 0.0
    %2215 = vmatpush.msra.mxu0 0.0
    %2216 = vmatpush.msra.mxu0 0.0
    %2217 = vmatpush.msra.mxu0 0.0
    %2218 = vmatpush.msra.mxu0 0.0
    %2219 = vmatpush.msra.mxu0 0.0
    %2220 = vmatpush.msra.mxu0 0.0
    %2221 = vmatpush.msra.mxu0 0.0
    %2222 = vmatpush.msra.mxu0 0.0
    %2223 = vmatpush.msra.mxu0 0.0
    %2224 = vmatpush.msra.mxu0 0.0
    %2225 = vmatpush.msra.mxu0 0.0
    %2226 = vmatpush.msra.mxu0 0.0
    %2227 = vmatpush.msra.mxu0 0.0
    %2228 = vmatpush.msra.mxu0 0.0
    %2229 = vmatpush.msra.mxu0 %v1449
    %2230 = vmatmul.f32.gmra.mxu0 %v2212
    %v2231 = vpop.f32.mrf.mxu0
    %v2232 = vadd.f32 0.0, %v2231
    %2233 = vdwg.mxu0
    %v2235 = vsel %vm1460, %v2000, 0
    %2237 = vmatpush.msra.mxu0 0.0
    %2238 = vmatpush.msra.mxu0 0.0
    %2239 = vmatpush.msra.mxu0 0.0
    %2240 = vmatpush.msra.mxu0 0.0
    %2241 = vmatpush.msra.mxu0 0.0
    %2242 = vmatpush.msra.mxu0 0.0
    %2243 = vmatpush.msra.mxu0 0.0
    %2244 = vmatpush.msra.mxu0 0.0
    %2245 = vmatpush.msra.mxu0 0.0
    %2246 = vmatpush.msra.mxu0 0.0
    %2247 = vmatpush.msra.mxu0 0.0
    %2248 = vmatpush.msra.mxu0 0.0
    %2249 = vmatpush.msra.mxu0 0.0
    %2250 = vmatpush.msra.mxu0 0.0
    %2251 = vmatpush.msra.mxu0 0.0
    %2252 = vmatpush.msra.mxu0 %v1451
    %2253 = vmatmul.f32.gmra.mxu0 %v2235
    %v2254 = vpop.f32.mrf.mxu0
    %v2255 = vadd.f32 0.0, %v2254
    %2256 = vdwg.mxu0
    %v2258 = vsel %vm1460, %v2015, 0
    %2260 = vmatpush.msra.mxu0 0.0
    %2261 = vmatpush.msra.mxu0 0.0
    %2262 = vmatpush.msra.mxu0 0.0
    %2263 = vmatpush.msra.mxu0 0.0
    %2264 = vmatpush.msra.mxu0 0.0
    %2265 = vmatpush.msra.mxu0 0.0
    %2266 = vmatpush.msra.mxu0 0.0
    %2267 = vmatpush.msra.mxu0 0.0
    %2268 = vmatpush.msra.mxu0 0.0
    %2269 = vmatpush.msra.mxu0 0.0
    %2270 = vmatpush.msra.mxu0 0.0
    %2271 = vmatpush.msra.mxu0 0.0
    %2272 = vmatpush.msra.mxu0 0.0
    %2273 = vmatpush.msra.mxu0 0.0
    %2274 = vmatpush.msra.mxu0 0.0
    %2275 = vmatpush.msra.mxu0 %v1453
    %2276 = vmatmul.f32.gmra.mxu0 %v2258
    %v2277 = vpop.f32.mrf.mxu0
    %v2278 = vadd.f32 0.0, %v2277
    %2279 = vdwg.mxu0
    %v2281 = vsel %vm1460, %v2030, 0
    %2283 = vmatpush.msra.mxu0 0.0
    %2284 = vmatpush.msra.mxu0 0.0
    %2285 = vmatpush.msra.mxu0 0.0
    %2286 = vmatpush.msra.mxu0 0.0
    %2287 = vmatpush.msra.mxu0 0.0
    %2288 = vmatpush.msra.mxu0 0.0
    %2289 = vmatpush.msra.mxu0 0.0
    %2290 = vmatpush.msra.mxu0 0.0
    %2291 = vmatpush.msra.mxu0 0.0
    %2292 = vmatpush.msra.mxu0 0.0
    %2293 = vmatpush.msra.mxu0 0.0
    %2294 = vmatpush.msra.mxu0 0.0
    %2295 = vmatpush.msra.mxu0 0.0
    %2296 = vmatpush.msra.mxu0 0.0
    %2297 = vmatpush.msra.mxu0 0.0
    %2298 = vmatpush.msra.mxu0 %v1455
    %2299 = vmatmul.f32.gmra.mxu0 %v2281
    %v2300 = vpop.f32.mrf.mxu0
    %v2301 = vadd.f32 0.0, %v2300
    %2302 = vdwg.mxu0
    %v2304 = vsel %vm1460, %v2045, 0
    %2306 = vmatpush.msra.mxu0 0.0
    %2307 = vmatpush.msra.mxu0 0.0
    %2308 = vmatpush.msra.mxu0 0.0
    %2309 = vmatpush.msra.mxu0 0.0
    %2310 = vmatpush.msra.mxu0 0.0
    %2311 = vmatpush.msra.mxu0 0.0
    %2312 = vmatpush.msra.mxu0 0.0
    %2313 = vmatpush.msra.mxu0 0.0
    %2314 = vmatpush.msra.mxu0 0.0
    %2315 = vmatpush.msra.mxu0 0.0
    %2316 = vmatpush.msra.mxu0 0.0
    %2317 = vmatpush.msra.mxu0 0.0
    %2318 = vmatpush.msra.mxu0 0.0
    %2319 = vmatpush.msra.mxu0 0.0
    %2320 = vmatpush.msra.mxu0 0.0
    %2321 = vmatpush.msra.mxu0 %v1457
    %2322 = vmatmul.f32.gmra.mxu0 %v2304
    %v2323 = vpop.f32.mrf.mxu0
    %v2324 = vadd.f32 0.0, %v2323
    %2325 = vdwg.mxu0
    %v2327 = vsel %vm1460, %v2060, 0
    %2329 = vmatpush.msra.mxu0 0.0
    %2330 = vmatpush.msra.mxu0 0.0
    %2331 = vmatpush.msra.mxu0 0.0
    %2332 = vmatpush.msra.mxu0 0.0
    %2333 = vmatpush.msra.mxu0 0.0
    %2334 = vmatpush.msra.mxu0 0.0
    %2335 = vmatpush.msra.mxu0 0.0
    %2336 = vmatpush.msra.mxu0 0.0
    %2337 = vmatpush.msra.mxu0 0.0
    %2338 = vmatpush.msra.mxu0 0.0
    %2339 = vmatpush.msra.mxu0 0.0
    %2340 = vmatpush.msra.mxu0 0.0
    %2341 = vmatpush.msra.mxu0 0.0
    %2342 = vmatpush.msra.mxu0 0.0
    %2343 = vmatpush.msra.mxu0 0.0
    %2344 = vmatpush.msra.mxu0 %v1459
    %2345 = vmatmul.f32.gmra.mxu0 %v2327
    %v2346 = vpop.f32.mrf.mxu0
    %v2347 = vadd.f32 0.0, %v2346
    %2348 = vdwg.mxu0
    %v2349 = vrot.slane %v2140, 4
    %v2350 = vsel %vm172, %v2349, %v2094
    %v2351 = vrot.slane %v2094, 4
    %v2352 = vsel %vm172, %v2140, %v2351
    %v2354 = vunpack.c.l.s4 1983009808
    %v2355 = vunpack.c.0.s8 %v2354
    %v2356 = vperm.slane %v2350, %v2355
    %v2358 = vunpack.c.l.s4 1983009808
    %v2359 = vunpack.c.0.s8 %v2358
    %v2360 = vperm.slane %v2352, %v2359
    %v2361 = vrot.slane %v2163, 4
    %v2362 = vsel %vm172, %v2361, %v2117
    %v2363 = vrot.slane %v2117, 4
    %v2364 = vsel %vm172, %v2163, %v2363
    %v2366 = vunpack.c.l.s4 1983009808
    %v2367 = vunpack.c.0.s8 %v2366
    %v2368 = vperm.slane %v2362, %v2367
    %v2370 = vunpack.c.l.s4 1983009808
    %v2371 = vunpack.c.0.s8 %v2370
    %v2372 = vperm.slane %v2364, %v2371
    %v2373 = vrot.slane %v2186, 4
    %v2374 = vsel %vm172, 0.0, %v2373
    %v2376 = vunpack.c.l.s4 1983009808
    %v2377 = vunpack.c.0.s8 %v2376
    %v2378 = vperm.slane %v2186, %v2377
    %v2380 = vunpack.c.l.s4 1983009808
    %v2381 = vunpack.c.0.s8 %v2380
    %v2382 = vperm.slane %v2374, %v2381
    %v2383 = vrot.slane %v2209, 4
    %v2384 = vsel %vm172, 0.0, %v2383
    %v2386 = vunpack.c.l.s4 1983009808
    %v2387 = vunpack.c.0.s8 %v2386
    %v2388 = vperm.slane %v2209, %v2387
    %v2390 = vunpack.c.l.s4 1983009808
    %v2391 = vunpack.c.0.s8 %v2390
    %v2392 = vperm.slane %v2384, %v2391
    %v2393 = vrot.slane %v2368, 4
    %v2394 = vsel %vm172, %v2393, %v2356
    %v2395 = vrot.slane %v2356, 4
    %v2396 = vsel %vm172, %v2368, %v2395
    %v2398 = vunpack.c.l.s4 1934713408
    %v2399 = vunpack.c.0.s8 %v2398
    %v2400 = vperm.slane %v2394, %v2399
    %v2402 = vunpack.c.l.s4 1934713408
    %v2403 = vunpack.c.0.s8 %v2402
    %v2404 = vperm.slane %v2396, %v2403
    %v2405 = vrot.slane %v2372, 4
    %v2406 = vsel %vm172, %v2405, %v2360
    %v2407 = vrot.slane %v2360, 4
    %v2408 = vsel %vm172, %v2372, %v2407
    %v2410 = vunpack.c.l.s4 1934713408
    %v2411 = vunpack.c.0.s8 %v2410
    %v2412 = vperm.slane %v2406, %v2411
    %v2414 = vunpack.c.l.s4 1934713408
    %v2415 = vunpack.c.0.s8 %v2414
    %v2416 = vperm.slane %v2408, %v2415
    %v2417 = vrot.slane %v2388, 4
    %v2418 = vsel %vm172, %v2417, %v2378
    %v2419 = vrot.slane %v2378, 4
    %v2420 = vsel %vm172, %v2388, %v2419
    %v2422 = vunpack.c.l.s4 1934713408
    %v2423 = vunpack.c.0.s8 %v2422
    %v2424 = vperm.slane %v2418, %v2423
    %v2426 = vunpack.c.l.s4 1934713408
    %v2427 = vunpack.c.0.s8 %v2426
    %v2428 = vperm.slane %v2420, %v2427
    %v2429 = vrot.slane %v2392, 4
    %v2430 = vsel %vm172, %v2429, %v2382
    %v2431 = vrot.slane %v2382, 4
    %v2432 = vsel %vm172, %v2392, %v2431
    %v2434 = vunpack.c.l.s4 1934713408
    %v2435 = vunpack.c.0.s8 %v2434
    %v2436 = vperm.slane %v2430, %v2435
    %v2438 = vunpack.c.l.s4 1934713408
    %v2439 = vunpack.c.0.s8 %v2438
    %v2440 = vperm.slane %v2432, %v2439
    %v2441 = vrot.slane %v2424, 4
    %v2442 = vsel %vm172, %v2441, %v2400
    %v2443 = vrot.slane %v2400, 4
    %v2444 = vsel %vm172, %v2424, %v2443
    %v2445 = vrot.slane %v2428, 4
    %v2446 = vsel %vm172, %v2445, %v2404
    %v2447 = vrot.slane %v2404, 4
    %v2448 = vsel %vm172, %v2428, %v2447
    %v2449 = vrot.slane %v2436, 4
    %v2450 = vsel %vm172, %v2449, %v2412
    %v2451 = vrot.slane %v2412, 4
    %v2452 = vsel %vm172, %v2436, %v2451
    %v2453 = vrot.slane %v2440, 4
    %v2454 = vsel %vm172, %v2453, %v2416
    %v2455 = vrot.slane %v2416, 4
    %v2456 = vsel %vm172, %v2440, %v2455
    %v2457 = vrot.slane %v2278, 4
    %v2458 = vsel %vm172, %v2457, %v2232
    %v2459 = vrot.slane %v2232, 4
    %v2460 = vsel %vm172, %v2278, %v2459
    %v2462 = vunpack.c.l.s4 1983009808
    %v2463 = vunpack.c.0.s8 %v2462
    %v2464 = vperm.slane %v2458, %v2463
    %v2466 = vunpack.c.l.s4 1983009808
    %v2467 = vunpack.c.0.s8 %v2466
    %v2468 = vperm.slane %v2460, %v2467
    %v2469 = vrot.slane %v2301, 4
    %v2470 = vsel %vm172, %v2469, %v2255
    %v2471 = vrot.slane %v2255, 4
    %v2472 = vsel %vm172, %v2301, %v2471
    %v2474 = vunpack.c.l.s4 1983009808
    %v2475 = vunpack.c.0.s8 %v2474
    %v2476 = vperm.slane %v2470, %v2475
    %v2478 = vunpack.c.l.s4 1983009808
    %v2479 = vunpack.c.0.s8 %v2478
    %v2480 = vperm.slane %v2472, %v2479
    %v2481 = vrot.slane %v2324, 4
    %v2482 = vsel %vm172, 0.0, %v2481
    %v2484 = vunpack.c.l.s4 1983009808
    %v2485 = vunpack.c.0.s8 %v2484
    %v2486 = vperm.slane %v2324, %v2485
    %v2488 = vunpack.c.l.s4 1983009808
    %v2489 = vunpack.c.0.s8 %v2488
    %v2490 = vperm.slane %v2482, %v2489
    %v2491 = vrot.slane %v2347, 4
    %v2492 = vsel %vm172, 0.0, %v2491
    %v2494 = vunpack.c.l.s4 1983009808
    %v2495 = vunpack.c.0.s8 %v2494
    %v2496 = vperm.slane %v2347, %v2495
    %v2498 = vunpack.c.l.s4 1983009808
    %v2499 = vunpack.c.0.s8 %v2498
    %v2500 = vperm.slane %v2492, %v2499
    %v2501 = vrot.slane %v2476, 4
    %v2502 = vsel %vm172, %v2501, %v2464
    %v2503 = vrot.slane %v2464, 4
    %v2504 = vsel %vm172, %v2476, %v2503
    %v2506 = vunpack.c.l.s4 1934713408
    %v2507 = vunpack.c.0.s8 %v2506
    %v2508 = vperm.slane %v2502, %v2507
    %v2510 = vunpack.c.l.s4 1934713408
    %v2511 = vunpack.c.0.s8 %v2510
    %v2512 = vperm.slane %v2504, %v2511
    %v2513 = vrot.slane %v2480, 4
    %v2514 = vsel %vm172, %v2513, %v2468
    %v2515 = vrot.slane %v2468, 4
    %v2516 = vsel %vm172, %v2480, %v2515
    %v2518 = vunpack.c.l.s4 1934713408
    %v2519 = vunpack.c.0.s8 %v2518
    %v2520 = vperm.slane %v2514, %v2519
    %v2522 = vunpack.c.l.s4 1934713408
    %v2523 = vunpack.c.0.s8 %v2522
    %v2524 = vperm.slane %v2516, %v2523
    %v2525 = vrot.slane %v2496, 4
    %v2526 = vsel %vm172, %v2525, %v2486
    %v2527 = vrot.slane %v2486, 4
    %v2528 = vsel %vm172, %v2496, %v2527
    %v2530 = vunpack.c.l.s4 1934713408
    %v2531 = vunpack.c.0.s8 %v2530
    %v2532 = vperm.slane %v2526, %v2531
    %v2534 = vunpack.c.l.s4 1934713408
    %v2535 = vunpack.c.0.s8 %v2534
    %v2536 = vperm.slane %v2528, %v2535
    %v2537 = vrot.slane %v2500, 4
    %v2538 = vsel %vm172, %v2537, %v2490
    %v2539 = vrot.slane %v2490, 4
    %v2540 = vsel %vm172, %v2500, %v2539
    %v2542 = vunpack.c.l.s4 1934713408
    %v2543 = vunpack.c.0.s8 %v2542
    %v2544 = vperm.slane %v2538, %v2543
    %v2546 = vunpack.c.l.s4 1934713408
    %v2547 = vunpack.c.0.s8 %v2546
    %v2548 = vperm.slane %v2540, %v2547
    %v2549 = vrot.slane %v2532, 4
    %v2550 = vsel %vm172, %v2549, %v2508
    %v2551 = vrot.slane %v2508, 4
    %v2552 = vsel %vm172, %v2532, %v2551
    %v2553 = vrot.slane %v2536, 4
    %v2554 = vsel %vm172, %v2553, %v2512
    %v2555 = vrot.slane %v2512, 4
    %v2556 = vsel %vm172, %v2536, %v2555
    %v2557 = vrot.slane %v2544, 4
    %v2558 = vsel %vm172, %v2557, %v2520
    %v2559 = vrot.slane %v2520, 4
    %v2560 = vsel %vm172, %v2544, %v2559
    %v2561 = vrot.slane %v2548, 4
    %v2562 = vsel %vm172, %v2561, %v2524
    %v2563 = vrot.slane %v2524, 4
    %v2564 = vsel %vm172, %v2548, %v2563
    %v2565 = vrot.slane %v2446, 4
    %v2566 = vsel %vm172, %v2565, %v2442
    %v2567 = vrot.slane %v2442, 4
    %v2568 = vsel %vm172, %v2446, %v2567
    %v2570 = vunpack.c.l.s4 1983009808
    %v2571 = vunpack.c.0.s8 %v2570
    %v2572 = vperm.slane %v2566, %v2571
    %v2574 = vunpack.c.l.s4 1983009808
    %v2575 = vunpack.c.0.s8 %v2574
    %v2576 = vperm.slane %v2568, %v2575
    %v2577 = vrot.slane %v2448, 4
    %v2578 = vsel %vm172, %v2577, %v2444
    %v2579 = vrot.slane %v2444, 4
    %v2580 = vsel %vm172, %v2448, %v2579
    %v2582 = vunpack.c.l.s4 1983009808
    %v2583 = vunpack.c.0.s8 %v2582
    %v2584 = vperm.slane %v2578, %v2583
    %v2586 = vunpack.c.l.s4 1983009808
    %v2587 = vunpack.c.0.s8 %v2586
    %v2588 = vperm.slane %v2580, %v2587
    %v2589 = vrot.slane %v2454, 4
    %v2590 = vsel %vm172, %v2589, %v2450
    %v2591 = vrot.slane %v2450, 4
    %v2592 = vsel %vm172, %v2454, %v2591
    %v2594 = vunpack.c.l.s4 1983009808
    %v2595 = vunpack.c.0.s8 %v2594
    %v2596 = vperm.slane %v2590, %v2595
    %v2598 = vunpack.c.l.s4 1983009808
    %v2599 = vunpack.c.0.s8 %v2598
    %v2600 = vperm.slane %v2592, %v2599
    %v2601 = vrot.slane %v2456, 4
    %v2602 = vsel %vm172, %v2601, %v2452
    %v2603 = vrot.slane %v2452, 4
    %v2604 = vsel %vm172, %v2456, %v2603
    %v2606 = vunpack.c.l.s4 1983009808
    %v2607 = vunpack.c.0.s8 %v2606
    %v2608 = vperm.slane %v2602, %v2607
    %v2610 = vunpack.c.l.s4 1983009808
    %v2611 = vunpack.c.0.s8 %v2610
    %v2612 = vperm.slane %v2604, %v2611
    %v2613 = vrot.slane %v2584, 4
    %v2614 = vsel %vm172, %v2613, %v2572
    %v2615 = vrot.slane %v2572, 4
    %v2616 = vsel %vm172, %v2584, %v2615
    %v2618 = vunpack.c.l.s4 1934713408
    %v2619 = vunpack.c.0.s8 %v2618
    %v2620 = vperm.slane %v2614, %v2619
    %v2622 = vunpack.c.l.s4 1934713408
    %v2623 = vunpack.c.0.s8 %v2622
    %v2624 = vperm.slane %v2616, %v2623
    %v2625 = vrot.slane %v2588, 4
    %v2626 = vsel %vm172, %v2625, %v2576
    %v2628 = vunpack.c.l.s4 1934713408
    %v2629 = vunpack.c.0.s8 %v2628
    %v2630 = vperm.slane %v2626, %v2629
    %v2631 = vrot.slane %v2608, 4
    %v2632 = vsel %vm172, %v2631, %v2596
    %v2633 = vrot.slane %v2596, 4
    %v2634 = vsel %vm172, %v2608, %v2633
    %v2636 = vunpack.c.l.s4 1934713408
    %v2637 = vunpack.c.0.s8 %v2636
    %v2638 = vperm.slane %v2632, %v2637
    %v2640 = vunpack.c.l.s4 1934713408
    %v2641 = vunpack.c.0.s8 %v2640
    %v2642 = vperm.slane %v2634, %v2641
    %v2643 = vrot.slane %v2612, 4
    %v2644 = vsel %vm172, %v2643, %v2600
    %v2646 = vunpack.c.l.s4 1934713408
    %v2647 = vunpack.c.0.s8 %v2646
    %v2648 = vperm.slane %v2644, %v2647
    %v2649 = vrot.slane %v2638, 4
    %v2650 = vsel %vm172, %v2649, %v2620
    %v2651 = vrot.slane %v2620, 4
    %v2652 = vsel %vm172, %v2638, %v2651
    %v2653 = vrot.slane %v2642, 4
    %v2654 = vsel %vm172, %v2653, %v2624
    %v2655 = vrot.slane %v2624, 4
    %v2656 = vsel %vm172, %v2642, %v2655
    %v2657 = vrot.slane %v2648, 4
    %v2658 = vsel %vm172, %v2657, %v2630
    %v2659 = vrot.slane %v2630, 4
    %v2660 = vsel %vm172, %v2648, %v2659
    %v2661 = vrot.slane %v2554, 4
    %v2662 = vsel %vm172, %v2661, %v2550
    %v2663 = vrot.slane %v2550, 4
    %v2664 = vsel %vm172, %v2554, %v2663
    %v2666 = vunpack.c.l.s4 1983009808
    %v2667 = vunpack.c.0.s8 %v2666
    %v2668 = vperm.slane %v2662, %v2667
    %v2670 = vunpack.c.l.s4 1983009808
    %v2671 = vunpack.c.0.s8 %v2670
    %v2672 = vperm.slane %v2664, %v2671
    %v2673 = vrot.slane %v2556, 4
    %v2674 = vsel %vm172, %v2673, %v2552
    %v2675 = vrot.slane %v2552, 4
    %v2676 = vsel %vm172, %v2556, %v2675
    %v2678 = vunpack.c.l.s4 1983009808
    %v2679 = vunpack.c.0.s8 %v2678
    %v2680 = vperm.slane %v2674, %v2679
    %v2682 = vunpack.c.l.s4 1983009808
    %v2683 = vunpack.c.0.s8 %v2682
    %v2684 = vperm.slane %v2676, %v2683
    %v2685 = vrot.slane %v2562, 4
    %v2686 = vsel %vm172, %v2685, %v2558
    %v2687 = vrot.slane %v2558, 4
    %v2688 = vsel %vm172, %v2562, %v2687
    %v2690 = vunpack.c.l.s4 1983009808
    %v2691 = vunpack.c.0.s8 %v2690
    %v2692 = vperm.slane %v2686, %v2691
    %v2694 = vunpack.c.l.s4 1983009808
    %v2695 = vunpack.c.0.s8 %v2694
    %v2696 = vperm.slane %v2688, %v2695
    %v2697 = vrot.slane %v2564, 4
    %v2698 = vsel %vm172, %v2697, %v2560
    %v2699 = vrot.slane %v2560, 4
    %v2700 = vsel %vm172, %v2564, %v2699
    %v2702 = vunpack.c.l.s4 1983009808
    %v2703 = vunpack.c.0.s8 %v2702
    %v2704 = vperm.slane %v2698, %v2703
    %v2706 = vunpack.c.l.s4 1983009808
    %v2707 = vunpack.c.0.s8 %v2706
    %v2708 = vperm.slane %v2700, %v2707
    %v2709 = vrot.slane %v2680, 4
    %v2710 = vsel %vm172, %v2709, %v2668
    %v2711 = vrot.slane %v2668, 4
    %v2712 = vsel %vm172, %v2680, %v2711
    %v2714 = vunpack.c.l.s4 1934713408
    %v2715 = vunpack.c.0.s8 %v2714
    %v2716 = vperm.slane %v2710, %v2715
    %v2718 = vunpack.c.l.s4 1934713408
    %v2719 = vunpack.c.0.s8 %v2718
    %v2720 = vperm.slane %v2712, %v2719
    %v2721 = vrot.slane %v2684, 4
    %v2722 = vsel %vm172, %v2721, %v2672
    %v2724 = vunpack.c.l.s4 1934713408
    %v2725 = vunpack.c.0.s8 %v2724
    %v2726 = vperm.slane %v2722, %v2725
    %v2727 = vrot.slane %v2704, 4
    %v2728 = vsel %vm172, %v2727, %v2692
    %v2729 = vrot.slane %v2692, 4
    %v2730 = vsel %vm172, %v2704, %v2729
    %v2732 = vunpack.c.l.s4 1934713408
    %v2733 = vunpack.c.0.s8 %v2732
    %v2734 = vperm.slane %v2728, %v2733
    %v2736 = vunpack.c.l.s4 1934713408
    %v2737 = vunpack.c.0.s8 %v2736
    %v2738 = vperm.slane %v2730, %v2737
    %v2739 = vrot.slane %v2708, 4
    %v2740 = vsel %vm172, %v2739, %v2696
    %v2742 = vunpack.c.l.s4 1934713408
    %v2743 = vunpack.c.0.s8 %v2742
    %v2744 = vperm.slane %v2740, %v2743
    %v2745 = vrot.slane %v2734, 4
    %v2746 = vsel %vm172, %v2745, %v2716
    %v2747 = vrot.slane %v2716, 4
    %v2748 = vsel %vm172, %v2734, %v2747
    %v2749 = vrot.slane %v2738, 4
    %v2750 = vsel %vm172, %v2749, %v2720
    %v2751 = vrot.slane %v2720, 4
    %v2752 = vsel %vm172, %v2738, %v2751
    %v2753 = vrot.slane %v2744, 4
    %v2754 = vsel %vm172, %v2753, %v2726
    %v2755 = vrot.slane %v2726, 4
    %v2756 = vsel %vm172, %v2744, %v2755
    %2759 = vrot.lane.b32.xlu0 %v2652, 8
    %v2760 = vpop.permute.xlu0 %2759
    %2761 = vrot.lane.b32.xlu0 %v2748, 8
    %v2762 = vpop.permute.xlu0 %2761
    %2767 = vrot.lane.b32.xlu0 %v2654, 16
    %v2768 = vpop.permute.xlu0 %2767
    %2769 = vrot.lane.b32.xlu0 %v2750, 16
    %v2770 = vpop.permute.xlu0 %2769
    %2775 = vrot.lane.b32.xlu0 %v2656, 24
    %v2776 = vpop.permute.xlu0 %2775
    %2777 = vrot.lane.b32.xlu0 %v2752, 24
    %v2778 = vpop.permute.xlu0 %2777
    %2783 = vrot.lane.b32.xlu0 %v2658, 32
    %v2784 = vpop.permute.xlu0 %2783
    %2785 = vrot.lane.b32.xlu0 %v2754, 32
    %v2786 = vpop.permute.xlu0 %2785
    %2791 = vrot.lane.b32.xlu0 %v2660, 40
    %v2792 = vpop.permute.xlu0 %2791
    %2793 = vrot.lane.b32.xlu0 %v2756, 40
    %v2794 = vpop.permute.xlu0 %2793
    %v2797 = vsel %vm1460, %v2650, %v2760
    %v2798 = vsel %vm1460, %v2746, %v2762
    %vm2799 = vcmask 130048
    %v2800 = vsel %vm2799, %v2797, %v2768
    %v2801 = vsel %vm2799, %v2798, %v2770
    %vm2802 = vcmask 195584
    %v2803 = vsel %vm2802, %v2800, %v2776
    %v2804 = vsel %vm2802, %v2801, %v2778
    %vm2805 = vcmask 261120
    %v2806 = vsel %vm2805, %v2803, %v2784
    %v2807 = vsel %vm2805, %v2804, %v2786
    %vm2808 = vcmask 326656
    %v2809 = vsel %vm2808, %v2806, %v2792
    %v2810 = vsel %vm2808, %v2807, %v2794
    %vm2811 = vcmask 392192
    %2812 = vst.msk [vmem:[#allocation2] sm:$0xff] %vm2811, %v2809
    %2813 = vst.msk [vmem:[#allocation2 + $0x8] sm:$0xff] %vm2811, %v2810
    // Predicated region
    $region22: #{tpu_custom_call.1} parent=1 // pred_check
      _
    $region23: #{tpu_custom_call.1} parent=1 // pred_check_branch
      %2815 = sbr.rel (0) target = $region25
    $region24: #{tpu_custom_call.1} parent=1 // pred_region
      %2817 = vsyncadd [#allocation3], 0
      %s2818 = sshll.u32 [#allocation2], 4
      %s2819 = int_to_ptr.vmem [resolvable:$true] %s2818
      %s2820 = sshll.u32 %s5, 4
      %s2821 = int_to_ptr.hbm [resolvable:$true] %s2820
      %2826 = dma.vmem_to_hbm [thread:$0]  %s2819, 256, %s2821, [#allocation3], 128, 128, 8
    $region25: #{tpu_custom_call.1} parent=1 // pred_fallthru
      _
    // Predicated region
    $region26: #{tpu_custom_call.1} parent=1 // pred_check
      _
    $region27: #{tpu_custom_call.1} parent=1 // pred_check_branch
      %2828 = sbr.rel (0) target = $region29
    $region28: #{tpu_custom_call.1} parent=1 // pred_region
      %2830 = vsyncadd [#allocation5], 0
      %s2831 = sshll.u32 [#allocation4], 4
      %s2832 = int_to_ptr.vmem [resolvable:$true] %s2831
      %s2833 = sshll.u32 %s6, 4
      %s2834 = int_to_ptr.hbm [resolvable:$true] %s2833
      %2839 = dma.vmem_to_hbm [thread:$0]  %s2832, 1536, %s2834, [#allocation5], 128, 128, 8
    $region29: #{tpu_custom_call.1} parent=1 // pred_fallthru
      _
    // Predicated region
    $region30: #{tpu_custom_call.1} parent=1 // pred_check
      _
    $region31: #{tpu_custom_call.1} parent=1 // pred_check_branch
      %2841 = sbr.rel (0) target = $region33
    $region32: #{tpu_custom_call.1} parent=1 // pred_region
      %2843 = dma.done [#allocation3], 256
    $region33: #{tpu_custom_call.1} parent=1 // pred_fallthru
      _
    // Predicated region
    $region34: #{tpu_custom_call.1} parent=1 // pred_check
      _
    $region35: #{tpu_custom_call.1} parent=1 // pred_check_branch
      %2845 = sbr.rel (0) target = $region37
    $region36: #{tpu_custom_call.1} parent=1 // pred_region
      %2847 = dma.done [#allocation5], 1536
    $region37: #{tpu_custom_call.1} parent=1 // pred_fallthru
      _
    %2848 = vsyncpa [#allocation3], 1
    %2849 = vsyncpa [#allocation5], 1

</llo_original>
